<compile_context>
chip_gen: v5e
topology: v5e:2x2
jax: 0.10.0
libtpu: 0.0.40
codegen_flags: <defaults>
</compile_context>

<pallas_src>
import functools
import math

import jax
import jax.numpy as jnp
from jax.experimental import pallas as pl
from jax.experimental.pallas import tpu as pltpu


# --------------------------------------------------------------------------
# Pallas matmul kernel (full-K single pass, bias + optional ReLU fused)
# --------------------------------------------------------------------------
def _matmul_bias_kernel(a_ref, b_ref, bias_ref, o_ref, *, relu):
    acc = jnp.dot(a_ref[...], b_ref[...], preferred_element_type=jnp.float32)
    acc = acc + bias_ref[...]
    if relu:
        acc = jnp.maximum(acc, 0.0)
    o_ref[...] = acc.astype(o_ref.dtype)


def _round_up(x, m):
    return ((x + m - 1) // m) * m


def _cdiv(a, b):
    return -(-a // b)


def _pick_tn(N, K):
    """Widest N tile: full N if small, else a 128-multiple whose
    double-buffered bf16 weight slab stays under ~20 MiB."""
    if N <= 512:
        return N
    for tn in (1024, 512, 256, 128):
        if N % tn == 0 and K * tn * 2 * 2 <= 20 * 1024 * 1024:
            return tn
    return 128


def pallas_matmul_bias(a, b, bias, *, relu, out_dtype=jnp.bfloat16):
    """a: (M, K) bf16, b: (K, N) bf16, bias: (1, N) f32 -> (M, N) out_dtype.

    K is kept whole (single MXU pass per output tile), so the grid is only
    (M tiles, N tiles) and both axes are fully parallel (megacore-friendly).
    """
    M, K = a.shape
    K2, N = b.shape
    assert K == K2 and bias.shape == (1, N)

    # --- M tiling: balanced tiles of at most 1024 rows, multiples of 8. ---
    gm = max(1, _cdiv(M, 1024))
    tm = _round_up(_cdiv(M, gm), 8)
    gm = _cdiv(M, tm)
    Mp = gm * tm
    a_p = a if Mp == M else jnp.pad(a, ((0, Mp - M), (0, 0)))

    # --- N tiling. ---
    tn = _pick_tn(N, K)
    assert N % tn == 0
    gn = N // tn

    kernel = functools.partial(_matmul_bias_kernel, relu=relu)
    out = pl.pallas_call(
        kernel,
        out_shape=jax.ShapeDtypeStruct((Mp, N), out_dtype),
        grid=(gm, gn),
        in_specs=[
            pl.BlockSpec((tm, K), lambda i, j: (i, 0)),
            pl.BlockSpec((K, tn), lambda i, j: (0, j)),
            pl.BlockSpec((1, tn), lambda i, j: (0, j)),
        ],
        out_specs=pl.BlockSpec((tm, tn), lambda i, j: (i, j)),
        compiler_params=pltpu.CompilerParams(
            dimension_semantics=("parallel", "parallel"),
            vmem_limit_bytes=40 * 1024 * 1024),
    )(a_p, b, bias)
    return out if Mp == M else out[:M]


# --------------------------------------------------------------------------
# Conv (im2col in bf16 glue + Pallas matmul) and MaxPool (XLA-fused max)
# --------------------------------------------------------------------------
def conv2d_relu(x, w_mat, bias, *, k, stride, pad, relu=True):
    """x: (N, H, W, Cin) bf16; w_mat: (k*k*Cin, Cout) bf16; bias: (1, Cout)."""
    N, H, W, C = x.shape
    xp = jnp.pad(x, ((0, 0), (pad, pad), (pad, pad), (0, 0)))
    Ho = (H + 2 * pad - k) // stride + 1
    Wo = (W + 2 * pad - k) // stride + 1

    cols = []
    for kh in range(k):
        for kw in range(k):
            cols.append(xp[:,
                           kh:kh + stride * (Ho - 1) + 1:stride,
                           kw:kw + stride * (Wo - 1) + 1:stride, :])
    # patch feature order (kh, kw, cin) matches the w_mat row ordering.
    patches = jnp.concatenate(cols, axis=-1).reshape(N * Ho * Wo, k * k * C)

    out = pallas_matmul_bias(patches, w_mat, bias, relu=relu)
    return out.reshape(N, Ho, Wo, -1)


def maxpool_3x3_s2(x):
    """3x3 / stride-2 max pool (floor mode) on NHWC.

    Left to an XLA elementwise fusion over 9 strided window views: the
    activation is read once and the pooled output written once — no 9x
    stacked intermediate in HBM.
    """
    N, H, W, C = x.shape
    Ho = (H - 3) // 2 + 1
    Wo = (W - 3) // 2 + 1
    r = None
    for dh in range(3):
        for dw in range(3):
            win = x[:, dh:dh + 2 * (Ho - 1) + 1:2,
                    dw:dw + 2 * (Wo - 1) + 1:2, :]
            r = win if r is None else jnp.maximum(r, win)
    return r


# --------------------------------------------------------------------------
# Parameters (deterministic synthetic init, shapes from AlexNet.__init__)
# Weights stored pre-reshaped + bf16; biases stored as (1, N) f32.
# --------------------------------------------------------------------------
def init_params(key):
    def conv_p(key, k, cin, cout):
        wk, bk = jax.random.split(key)
        std = 1.0 / math.sqrt(k * k * cin)
        w = jax.random.normal(wk, (k, k, cin, cout), jnp.float32) * std
        b = jax.random.normal(bk, (cout,), jnp.float32) * std
        return (w.reshape(k * k * cin, cout).astype(jnp.bfloat16),
                b.reshape(1, cout))

    def lin_p(key, fin, fout):
        wk, bk = jax.random.split(key)
        std = 1.0 / math.sqrt(fin)
        w = jax.random.normal(wk, (fin, fout), jnp.float32) * std
        b = jax.random.normal(bk, (fout,), jnp.float32) * std
        return w.astype(jnp.bfloat16), b.reshape(1, fout)

    keys = jax.random.split(key, 8)
    p = {}
    p["c1_w"], p["c1_b"] = conv_p(keys[0], 11, 1, 96)
    p["c2_w"], p["c2_b"] = conv_p(keys[1], 5, 96, 256)
    p["c3_w"], p["c3_b"] = conv_p(keys[2], 3, 256, 384)
    p["c4_w"], p["c4_b"] = conv_p(keys[3], 3, 384, 384)
    p["c5_w"], p["c5_b"] = conv_p(keys[4], 3, 384, 256)
    p["fc1_w"], p["fc1_b"] = lin_p(keys[5], 1024, 512)      # flatten_feats
    p["fc2_w"], p["fc2_b"] = lin_p(keys[6], 512 * 9, 4096)  # clasif_concatenated
    p["fc3_w"], p["fc3_b"] = lin_p(keys[7], 4096, 100)
    return p


# --------------------------------------------------------------------------
# Forward pass (JigsawNetAlex.forward)
# --------------------------------------------------------------------------
def jigsaw_forward(x, p):
    """x: (B, T, C, H, W) float32 (T=9, H=W=64, C=1) -> (B, 100) float32."""
    B, T, C, H, W = x.shape
    # Per-tile processing is independent -> fold batch and tile dims together
    # (equivalent to the Python loop over batches in the PyTorch forward).
    h = x.reshape(B * T, C, H, W).transpose(0, 2, 3, 1)  # NCHW -> NHWC
    h = h.astype(jnp.bfloat16)

    # features
    h = conv2d_relu(h, p["c1_w"], p["c1_b"], k=11, stride=2, pad=2)
    h = maxpool_3x3_s2(h)
    h = conv2d_relu(h, p["c2_w"], p["c2_b"], k=5, stride=1, pad=2)
    h = maxpool_3x3_s2(h)
    h = conv2d_relu(h, p["c3_w"], p["c3_b"], k=3, stride=1, pad=1)
    h = conv2d_relu(h, p["c4_w"], p["c4_b"], k=3, stride=1, pad=1)
    h = conv2d_relu(h, p["c5_w"], p["c5_b"], k=3, stride=1, pad=1)
    h = maxpool_3x3_s2(h)

    # nn.Flatten() on NCHW tensors -> transpose back before flattening.
    h = h.transpose(0, 3, 1, 2).reshape(B * T, -1)  # (B*T, 1024)

    # flatten_feats: Linear(1024,512) + ReLU (+ Dropout=identity) + Flatten(0)
    h = pallas_matmul_bias(h, p["fc1_w"], p["fc1_b"], relu=True)  # (B*T, 512)
    y = h.reshape(B, T * 512)  # == torch.vstack of per-batch Flatten(0) outs

    # clasif_concatenated: Linear(4608,4096)+ReLU (+Dropout) + Linear(4096,100)
    y = pallas_matmul_bias(y, p["fc2_w"], p["fc2_b"], relu=True)
    y = pallas_matmul_bias(y, p["fc3_w"], p["fc3_b"], relu=False,
                           out_dtype=jnp.float32)
    return y


# --------------------------------------------------------------------------
if __name__ == "__main__":
    key = jax.random.PRNGKey(0)
    pkey, xkey = jax.random.split(key)

    params = init_params(pkey)

    # (B, tiles, C, H, W); 64x64 tiles make the final flatten exactly 1024
    # features (256 channels x 2 x 2), as required by Linear(1024, 512).
    B, T, C, H, W = 2, 9, 1, 64, 64
    x = jax.random.normal(xkey, (B, T, C, H, W), jnp.float32)

    y = jigsaw_forward(x, params)
    y = jax.block_until_ready(y)

    assert y.shape == (B, 100), y.shape
    assert y.dtype == jnp.float32
    print("KERNEL_OK")
</pallas_src>

<mosaic_0001>
module attributes {stable_mosaic.version = 11 : i64} {
  func.func @_matmul_bias_kernel(%arg0: i32, %arg1: i32, %arg2: memref<1016x121xbf16, #tpu.memory_space<vmem>>, %arg3: memref<121x96xbf16, #tpu.memory_space<vmem>>, %arg4: memref<1x96xf32, #tpu.memory_space<vmem>>, %arg5: memref<1016x96xbf16, #tpu.memory_space<vmem>>) attributes {dimension_semantics = [#tpu.dimension_semantics<parallel>, #tpu.dimension_semantics<parallel>], iteration_bounds = array<i64: 15, 1>, scalar_prefetch = 0 : i64, scratch_operands = 0 : i64, tpu.core_type = #tpu.core_type<tc>, window_params = [{transform_indices = @transform_0, window_bounds = array<i64: 1016, 121>}, {transform_indices = @transform_1, window_bounds = array<i64: 121, 96>}, {transform_indices = @transform_2, window_bounds = array<i64: 1, 96>}, {transform_indices = @transform_3, window_bounds = array<i64: 1016, 96>}]} {
    %c0 = arith.constant 0 : index
    %c0_0 = arith.constant 0 : index
    %0 = vector.load %arg2[%c0, %c0_0] : memref<1016x121xbf16, #tpu.memory_space<vmem>>, vector<1016x121xbf16>
    %c0_1 = arith.constant 0 : index
    %c0_2 = arith.constant 0 : index
    %1 = vector.load %arg3[%c0_1, %c0_2] : memref<121x96xbf16, #tpu.memory_space<vmem>>, vector<121x96xbf16>
    %cst = arith.constant dense<0.000000e+00> : vector<1016x96xf32>
    %2 = tpu.matmul %0, %1, %cst {dimension_numbers = #tpu.dot_dimension_numbers<[1], [0], [0], [1], [0, 0, 1, 1], [], []>} : vector<1016x121xbf16>, vector<121x96xbf16>, vector<1016x96xf32> -> vector<1016x96xf32>
    %c0_3 = arith.constant 0 : index
    %c0_4 = arith.constant 0 : index
    %3 = vector.load %arg4[%c0_3, %c0_4] : memref<1x96xf32, #tpu.memory_space<vmem>>, vector<1x96xf32>
    %4 = vector.broadcast %3 : vector<1x96xf32> to vector<1016x96xf32>
    %5 = arith.addf %2, %4 : vector<1016x96xf32>
    %cst_5 = arith.constant 0.000000e+00 : f32
    %6 = vector.broadcast %cst_5 : f32 to vector<1016x96xf32>
    %7 = arith.maximumf %5, %6 : vector<1016x96xf32>
    %8 = arith.truncf %7 : vector<1016x96xf32> to vector<1016x96xbf16>
    %c0_6 = arith.constant 0 : index
    %c0_7 = arith.constant 0 : index
    %9 = vector.load %arg5[%c0_6, %c0_7] : memref<1016x96xbf16, #tpu.memory_space<vmem>>, vector<1016x96xbf16>
    tpu.vector_store %arg5[%c0_6, %c0_7], %8 {strides = array<i32>} : memref<1016x96xbf16, #tpu.memory_space<vmem>>, vector<1016x96xbf16>,
    return
  }
  func.func @transform_0(%arg0: i32, %arg1: i32) -> (i32, i32) {
    %c0_i32 = arith.constant 0 : i32
    %c0_i32_0 = arith.constant 0 : i32
    return %arg0, %c0_i32 : i32, i32
  }
  func.func @transform_1(%arg0: i32, %arg1: i32) -> (i32, i32) {
    %c0_i32 = arith.constant 0 : i32
    %c0_i32_0 = arith.constant 0 : i32
    return %c0_i32, %arg1 : i32, i32
  }
  func.func @transform_2(%arg0: i32, %arg1: i32) -> (i32, i32) {
    %c0_i32 = arith.constant 0 : i32
    %c0_i32_0 = arith.constant 0 : i32
    return %c0_i32, %arg1 : i32, i32
  }
  func.func @transform_3(%arg0: i32, %arg1: i32) -> (i32, i32) {
    %c0_i32 = arith.constant 0 : i32
    return %arg0, %arg1 : i32, i32
  }
}

</mosaic_0001>

<llo_original>
// kernel: tpu_custom_call.1
$region0: #{tpu_custom_call.1}
  #allocation0 [shape = 'u32[]', space=smem, size = 0x4, offset = 0x4, fixed_abs, tag = 'smem constant byte address 0x4 - core index']
  #allocation1 [shape = 'u32[72,128]{1,0:T(1,128)}', space=vmem, size = 0x9000, scoped, tag = 'internal scratch']
  %s0 = inlined_call_operand.hbm [shape: bf16[15240,121], index: 0, kind: input, shape index: {}]
  %s1 = inlined_call_operand.vmem [shape: bf16[121,96], index: 1, kind: input, shape index: {}]
  %s2 = inlined_call_operand.hbm [shape: f32[1,96], index: 2, kind: input, shape index: {}]
  %s3 = inlined_call_operand.vmem [shape: bf16[15240,96], index: 3, kind: output, shape index: {}]
  %s4 = sld [smem:[#allocation0]]
  $region53: #{tpu_custom_call.1} parent=0
    _
  %s6 = ssub.s32 1, %s4
  %s7 = scalar_select 0, %s6, %s4
  $region1: #{tpu_custom_call.1} parent=0
    #allocation2 [shape = 'u8[520192]{0}', space=vmem, size = 0x7f000, scoped, tag = 'input window, operand 0']
    #allocation3 [shape = 's32[2]{0}', space=sflag, size = 0x8, scoped, tag = 'scoped memory for tpu_custom_call.1']
    #allocation4 [shape = 'u8[512]{0}', space=vmem, size = 0x400, scoped, tag = 'input window, operand 2, single buffered']
    #allocation5 [shape = 's32[1]{0}', space=sflag, size = 0x4, scoped, tag = 'scoped memory for tpu_custom_call.1']
    %8 = vsyncpa [#allocation3], 0
    %s9 = scalar_lea.sflag [#allocation3], 1
    %10 = vsyncpa %s9, 0
    %11 = vsyncpa [#allocation5], 0
    loop: start=0, step=1, limit=17
    $region2: #{tpu_custom_call.1} parent=1 // loop_pre_header
      _
    $region3: #{tpu_custom_call.1} parent=1 // loop_header
      %s13 = sphi 0, %s17
      %p14 = scmp.ge.s32.totalorder %s13, 17
      %s20 = sphi 0, %s32
      %s21 = sphi 0, %s28
      %s22 = sphi 0, %s20
      %s23 = sphi 0, %s21
      %s24 = sphi 0, %s22
      %s25 = sphi 0, %s23
      %s35 = sphi 0, %s37
      %s38 = sphi 0, %s35
      %s39 = sphi 0, %s38
      %s55 = sphi 0, %s39
      %s61 = sphi 0, %s63
      %s64 = sphi 0, %s61
      %s65 = sphi 0, %s64
      %s81 = sphi 0, %s65
      %s87 = sphi 0, %s89
      %s90 = sphi 0, %s87
      %s91 = sphi 0, %s90
      %s107 = sphi 0, %s91
      %s115 = sphi 0, %s117
      %s118 = sphi 0, %s115
      %s119 = sphi 0, %s118
      %s135 = sphi 0, %s119
    $region4: #{tpu_custom_call.1} parent=1 // loop_header_branch
      %16 = sbr.rel (%p14) target = $region8
    $region5: #{tpu_custom_call.1} parent=1 // loop_body
      %s18 = ssub.s32 %s13, 1
      %s19 = ssub.s32 %s13, 2
      %s26 = sadd.s32 1, %s21
      %p27 = scmp.ge.s32.totalorder %s26, 1
      %s28 = scalar_select %p27, 0, %s26
      %s29 = sadd.s32 1, %s20
      %s30 = scalar_select %p27, %s29, %s20
      %p31 = scmp.ge.s32.totalorder %s30, 15
      %s32 = scalar_select %p31, 0, %s30
      %s33 = ssub.s32 %s20, %s32
      %p34 = scmp.eq.s32.totalorder %s33, 0
      %s36 = sadd.s32 %s35, 1
      %s37 = scalar_select %p34, %s35, %s36
      %p40 = pneg %p34
      %p41 = scmp.eq.s32.totalorder %s13, 14
      %p42 = por %p40, %p41
      %p43 = scmp.ne.s32.totalorder %s35, %s38
      %p44 = scmp.eq.s32.totalorder %s13, 0
      %p45 = por %p43, %p44
      %p46 = scmp.ne.s32.totalorder %s35, %s38
      %p47 = scmp.eq.s32.totalorder %s18, 14
      %p48 = por %p46, %p47
      %p49 = scmp.ne.s32.totalorder %s38, %s39
      %p50 = scmp.eq.s32.totalorder %s18, 0
      %p51 = por %p49, %p50
      %p52 = scmp.ne.s32.totalorder %s38, %s39
      %p53 = scmp.eq.s32.totalorder %s19, 14
      %p54 = por %p52, %p53
      %p56 = scmp.ne.s32.totalorder %s39, %s55
      %p57 = scmp.eq.s32.totalorder %s19, 0
      %p58 = por %p56, %p57
      %s59 = ssub.s32 %s21, %s28
      %p60 = scmp.eq.s32.totalorder %s59, 0
      %s62 = sadd.s32 %s61, 1
      %s63 = scalar_select %p60, %s61, %s62
      %p66 = pneg %p60
      %p67 = scmp.eq.s32.totalorder %s13, 14
      %p68 = por %p66, %p67
      %p69 = scmp.ne.s32.totalorder %s61, %s64
      %p70 = scmp.eq.s32.totalorder %s13, 0
      %p71 = por %p69, %p70
      %p72 = scmp.ne.s32.totalorder %s61, %s64
      %p73 = scmp.eq.s32.totalorder %s18, 14
      %p74 = por %p72, %p73
      %p75 = scmp.ne.s32.totalorder %s64, %s65
      %p76 = scmp.eq.s32.totalorder %s18, 0
      %p77 = por %p75, %p76
      %p78 = scmp.ne.s32.totalorder %s64, %s65
      %p79 = scmp.eq.s32.totalorder %s19, 14
      %p80 = por %p78, %p79
      %p82 = scmp.ne.s32.totalorder %s65, %s81
      %p83 = scmp.eq.s32.totalorder %s19, 0
      %p84 = por %p82, %p83
      %s85 = ssub.s32 %s21, %s28
      %p86 = scmp.eq.s32.totalorder %s85, 0
      %s88 = sadd.s32 %s87, 1
      %s89 = scalar_select %p86, %s87, %s88
      %p92 = pneg %p86
      %p93 = scmp.eq.s32.totalorder %s13, 14
      %p94 = por %p92, %p93
      %p95 = scmp.ne.s32.totalorder %s87, %s90
      %p96 = scmp.eq.s32.totalorder %s13, 0
      %p97 = por %p95, %p96
      %p98 = scmp.ne.s32.totalorder %s87, %s90
      %p99 = scmp.eq.s32.totalorder %s18, 14
      %p100 = por %p98, %p99
      %p101 = scmp.ne.s32.totalorder %s90, %s91
      %p102 = scmp.eq.s32.totalorder %s18, 0
      %p103 = por %p101, %p102
      %p104 = scmp.ne.s32.totalorder %s90, %s91
      %p105 = scmp.eq.s32.totalorder %s19, 14
      %p106 = por %p104, %p105
      %p108 = scmp.ne.s32.totalorder %s91, %s107
      %p109 = scmp.eq.s32.totalorder %s19, 0
      %p110 = por %p108, %p109
      %s111 = ssub.s32 %s20, %s32
      %s112 = ssub.s32 %s21, %s28
      %s113 = sor.u32 %s111, %s112
      %p114 = scmp.eq.s32.totalorder %s113, 0
      %s116 = sadd.s32 %s115, 1
      %s117 = scalar_select %p114, %s115, %s116
      %p120 = pneg %p114
      %p121 = scmp.eq.s32.totalorder %s13, 14
      %p122 = por %p120, %p121
      %p123 = scmp.ne.s32.totalorder %s115, %s118
      %p124 = scmp.eq.s32.totalorder %s13, 0
      %p125 = por %p123, %p124
      %p126 = scmp.ne.s32.totalorder %s115, %s118
      %p127 = scmp.eq.s32.totalorder %s18, 14
      %p128 = por %p126, %p127
      %p129 = scmp.ne.s32.totalorder %s118, %s119
      %p130 = scmp.eq.s32.totalorder %s18, 0
      %p131 = por %p129, %p130
      %p132 = scmp.ne.s32.totalorder %s118, %s119
      %p133 = scmp.eq.s32.totalorder %s19, 14
      %p134 = por %p132, %p133
      %p136 = scmp.ne.s32.totalorder %s119, %s135
      %p137 = scmp.eq.s32.totalorder %s19, 0
      %p138 = por %p136, %p137
      %p139 = scmp.le.s32.totalorder 1, %s13
      %p140 = scmp.lt.s32.totalorder %s13, 16
      %p141 = pnand %p139, %p140
      %p142 = pneg %p141
      // Predicated region
      $region9: #{tpu_custom_call.1} parent=5 // pred_check
        _
      $region10: #{tpu_custom_call.1} parent=5 // pred_check_branch
        %144 = sbr.rel (%p141) target = $region12
      $region11: #{tpu_custom_call.1} parent=5 // pred_region
        %s145 = ssub.s32 %s13, 1
        // Predicated region
        $region13: #{tpu_custom_call.1} parent=11 // pred_check
          %p146 = pneg %p77
        $region14: #{tpu_custom_call.1} parent=11 // pred_check_branch
          %148 = sbr.rel (%p146) target = $region16
        $region15: #{tpu_custom_call.1} parent=11 // pred_region
          %p149 = scmp.lt.s32.totalorder %s23, 0
          %s150 = scalar_select %p149, %s23, 0
          %s151 = smul.addr %s150, 4
          %s152 = scalar_lea.vmem %s1, %s151
        $region16: #{tpu_custom_call.1} parent=11 // pred_fallthru
          _
        // Predicated region
        $region17: #{tpu_custom_call.1} parent=11 // pred_check
          %p153 = pneg %p103
        $region18: #{tpu_custom_call.1} parent=11 // pred_check_branch
          %155 = sbr.rel (%p153) target = $region20
        $region19: #{tpu_custom_call.1} parent=11 // pred_region
          %157 = vsyncadd [#allocation5], 0
          %s158 = scalar_lea.hbm %s2, %s23
          %s160 = sshll.u32 %s158, 4
          %s161 = int_to_ptr.hbm [resolvable:$true] %s160
          %s162 = sshll.u32 [#allocation4], 4
          %s163 = int_to_ptr.vmem [resolvable:$true] %s162
          %165 = dma.hbm_to_vmem [thread:$0]  %s161, 16, %s163, [#allocation5]
        $region20: #{tpu_custom_call.1} parent=11 // pred_fallthru
          _
      $region12: #{tpu_custom_call.1} parent=5 // pred_fallthru
        _
      %p166 = scmp.lt.s32.totalorder %s13, 15
      // Predicated region
      $region21: #{tpu_custom_call.1} parent=5 // pred_check
        %p167 = pneg %p166
      $region22: #{tpu_custom_call.1} parent=5 // pred_check_branch
        %169 = sbr.rel (%p167) target = $region24
      $region23: #{tpu_custom_call.1} parent=5 // pred_region
        // Predicated region
        $region25: #{tpu_custom_call.1} parent=23 // pred_check
          %p170 = pneg %p45
        $region26: #{tpu_custom_call.1} parent=23 // pred_check_branch
          %172 = sbr.rel (%p170) target = $region28
        $region27: #{tpu_custom_call.1} parent=23 // pred_region
          %s173 = sand.u32 %s35, 1
          %s174 = scalar_lea.sflag [#allocation3], %s173
          %s175 = sand.u32 %s35, 1
          %s176 = smul.addr %s175, 508
          %s177 = scalar_lea.vmem [#allocation2], %s176
          %s178 = smul.u32 127, %s20
          %180 = vsyncadd %s174, 0
          %s181 = smul.addr %s178, 4
          %s182 = scalar_lea.hbm %s0, %s181
          %s183 = sshll.u32 %s182, 4
          %s184 = int_to_ptr.hbm [resolvable:$true] %s183
          %s185 = sshll.u32 %s177, 4
          %s186 = int_to_ptr.vmem [resolvable:$true] %s185
          %191 = dma.hbm_to_vmem [thread:$0]  %s184, 8128, %s186, %s174, 64, 64, 4
        $region28: #{tpu_custom_call.1} parent=23 // pred_fallthru
          _
      $region24: #{tpu_custom_call.1} parent=5 // pred_fallthru
        _
      %p192 = scmp.le.s32.totalorder 1, %s13
      %p193 = scmp.lt.s32.totalorder %s13, 16
      %p194 = pnand %p192, %p193
      %p195 = pneg %p194
      // Predicated region
      $region29: #{tpu_custom_call.1} parent=5 // pred_check
        _
      $region30: #{tpu_custom_call.1} parent=5 // pred_check_branch
        %197 = sbr.rel (%p194) target = $region32
      $region31: #{tpu_custom_call.1} parent=5 // pred_region
        %s198 = ssub.s32 %s13, 1
        %s199 = sand.u32 %s38, 1
        %s200 = scalar_lea.sflag [#allocation3], %s199
        %s201 = sand.u32 %s38, 1
        %s202 = smul.addr %s201, 508
        %s203 = scalar_lea.vmem [#allocation2], %s202
        // Predicated region
        $region33: #{tpu_custom_call.1} parent=31 // pred_check
          %p204 = pneg %p51
        $region34: #{tpu_custom_call.1} parent=31 // pred_check_branch
          %206 = sbr.rel (%p204) target = $region36
        $region35: #{tpu_custom_call.1} parent=31 // pred_region
          %208 = dma.done %s200, 8128
        $region36: #{tpu_custom_call.1} parent=31 // pred_fallthru
          _
        // Predicated region
        $region37: #{tpu_custom_call.1} parent=31 // pred_check
          %p209 = pneg %p103
        $region38: #{tpu_custom_call.1} parent=31 // pred_check_branch
          %211 = sbr.rel (%p209) target = $region40
        $region39: #{tpu_custom_call.1} parent=31 // pred_region
          %213 = dma.done [#allocation5], 16
        $region40: #{tpu_custom_call.1} parent=31 // pred_fallthru
          _
        %s214 = sand.u32 %s38, 1
        %s215 = scalar_lea.sflag [#allocation3], %s214
        %s216 = sand.u32 %s38, 1
        %s217 = smul.addr %s216, 508
        %s218 = scalar_lea.vmem [#allocation2], %s217
        %p219 = pneg %p51
        %p220 = pneg %p48
        %p221 = scmp.lt.s32.totalorder %s23, 0
        %s222 = scalar_select %p221, %s23, 0
        %s223 = smul.addr %s222, 4
        %s224 = scalar_lea.vmem %s1, %s223
        %p225 = pneg %p77
        %p226 = pneg %p74
        %p227 = pneg %p103
        %p228 = pneg %p100
        %p229 = pneg %p131
        %p230 = pneg %p128
        %s231 = smul.u32 127, %s22
        %p232 = scmp.lt.s32.totalorder %s231, 1904
        %s233 = scalar_select %p232, %s231, 1904
        %p234 = scmp.lt.s32.totalorder %s23, 0
        %s235 = scalar_select %p234, %s23, 0
        %s236 = sadd.s32 %s235, %s233
        %s237 = smul.addr %s236, 4
        %s238 = scalar_lea.vmem %s3, %s237
        %s239 = smul.u32 127, %s22
        %p240 = scmp.lt.s32.totalorder %s23, 0
        %s241 = scalar_select %p240, %s23, 0
        %s242 = smul.addr %s241, 4
        %s243 = scalar_lea.vmem %s1, %s242
        %s244 = smul.u32 127, %s22
        %p245 = scmp.lt.s32.totalorder %s244, 1904
        %s246 = scalar_select %p245, %s244, 1904
        %p247 = scmp.lt.s32.totalorder %s23, 0
        %s248 = scalar_select %p247, %s23, 0
        %s249 = sadd.s32 %s248, %s246
        %s250 = smul.addr %s249, 4
        %s251 = scalar_lea.vmem %s3, %s250
        %s252 = smul.u32 127, %s22
        %v253 = vld [vmem:[%s203] sm:$0xf]
        %v254 = vld [vmem:[%s203 + $0x4] sm:$0xf]
        %v255 = vld [vmem:[%s203 + $0x8] sm:$0xf]
        %v256 = vld [vmem:[%s203 + $0xc] sm:$0xf]
        %v257 = vld [vmem:[%s203 + $0x10] sm:$0xf]
        %v258 = vld [vmem:[%s203 + $0x14] sm:$0xf]
        %v259 = vld [vmem:[%s203 + $0x18] sm:$0xf]
        %v260 = vld [vmem:[%s203 + $0x1c] sm:$0xf]
        %v261 = vld [vmem:[%s203 + $0x20] sm:$0xf]
        %v262 = vld [vmem:[%s203 + $0x24] sm:$0xf]
        %v263 = vld [vmem:[%s203 + $0x28] sm:$0xf]
        %v264 = vld [vmem:[%s203 + $0x2c] sm:$0xf]
        %v265 = vld [vmem:[%s203 + $0x30] sm:$0xf]
        %v266 = vld [vmem:[%s203 + $0x34] sm:$0xf]
        %v267 = vld [vmem:[%s203 + $0x38] sm:$0xf]
        %v268 = vld [vmem:[%s203 + $0x3c] sm:$0xf]
        %v269 = vld [vmem:[%s203 + $0x40] sm:$0xf]
        %v270 = vld [vmem:[%s203 + $0x44] sm:$0xf]
        %v271 = vld [vmem:[%s203 + $0x48] sm:$0xf]
        %v272 = vld [vmem:[%s203 + $0x4c] sm:$0xf]
        %v273 = vld [vmem:[%s203 + $0x50] sm:$0xf]
        %v274 = vld [vmem:[%s203 + $0x54] sm:$0xf]
        %v275 = vld [vmem:[%s203 + $0x58] sm:$0xf]
        %v276 = vld [vmem:[%s203 + $0x5c] sm:$0xf]
        %v277 = vld [vmem:[%s203 + $0x60] sm:$0xf]
        %v278 = vld [vmem:[%s203 + $0x64] sm:$0xf]
        %v279 = vld [vmem:[%s203 + $0x68] sm:$0xf]
        %v280 = vld [vmem:[%s203 + $0x6c] sm:$0xf]
        %v281 = vld [vmem:[%s203 + $0x70] sm:$0xf]
        %v282 = vld [vmem:[%s203 + $0x74] sm:$0xf]
        %v283 = vld [vmem:[%s203 + $0x78] sm:$0xf]
        %v284 = vld [vmem:[%s203 + $0x7c] sm:$0xf]
        %v285 = vld [vmem:[%s203 + $0x80] sm:$0xf]
        %v286 = vld [vmem:[%s203 + $0x84] sm:$0xf]
        %v287 = vld [vmem:[%s203 + $0x88] sm:$0xf]
        %v288 = vld [vmem:[%s203 + $0x8c] sm:$0xf]
        %v289 = vld [vmem:[%s203 + $0x90] sm:$0xf]
        %v290 = vld [vmem:[%s203 + $0x94] sm:$0xf]
        %v291 = vld [vmem:[%s203 + $0x98] sm:$0xf]
        %v292 = vld [vmem:[%s203 + $0x9c] sm:$0xf]
        %v293 = vld [vmem:[%s203 + $0xa0] sm:$0xf]
        %v294 = vld [vmem:[%s203 + $0xa4] sm:$0xf]
        %v295 = vld [vmem:[%s203 + $0xa8] sm:$0xf]
        %v296 = vld [vmem:[%s203 + $0xac] sm:$0xf]
        %v297 = vld [vmem:[%s203 + $0xb0] sm:$0xf]
        %v298 = vld [vmem:[%s203 + $0xb4] sm:$0xf]
        %v299 = vld [vmem:[%s203 + $0xb8] sm:$0xf]
        %v300 = vld [vmem:[%s203 + $0xbc] sm:$0xf]
        %v301 = vld [vmem:[%s203 + $0xc0] sm:$0xf]
        %v302 = vld [vmem:[%s203 + $0xc4] sm:$0xf]
        %v303 = vld [vmem:[%s203 + $0xc8] sm:$0xf]
        %v304 = vld [vmem:[%s203 + $0xcc] sm:$0xf]
        %v305 = vld [vmem:[%s203 + $0xd0] sm:$0xf]
        %v306 = vld [vmem:[%s203 + $0xd4] sm:$0xf]
        %v307 = vld [vmem:[%s203 + $0xd8] sm:$0xf]
        %v308 = vld [vmem:[%s203 + $0xdc] sm:$0xf]
        %v309 = vld [vmem:[%s203 + $0xe0] sm:$0xf]
        %v310 = vld [vmem:[%s203 + $0xe4] sm:$0xf]
        %v311 = vld [vmem:[%s203 + $0xe8] sm:$0xf]
        %v312 = vld [vmem:[%s203 + $0xec] sm:$0xf]
        %v313 = vld [vmem:[%s203 + $0xf0] sm:$0xf]
        %v314 = vld [vmem:[%s203 + $0xf4] sm:$0xf]
        %v315 = vld [vmem:[%s203 + $0xf8] sm:$0xf]
        %v316 = vld [vmem:[%s203 + $0xfc] sm:$0xf]
        %v317 = vld [vmem:[%s203 + $0x100] sm:$0xf]
        %v318 = vld [vmem:[%s203 + $0x104] sm:$0xf]
        %v319 = vld [vmem:[%s203 + $0x108] sm:$0xf]
        %v320 = vld [vmem:[%s203 + $0x10c] sm:$0xf]
        %v321 = vld [vmem:[%s203 + $0x110] sm:$0xf]
        %v322 = vld [vmem:[%s203 + $0x114] sm:$0xf]
        %v323 = vld [vmem:[%s203 + $0x118] sm:$0xf]
        %v324 = vld [vmem:[%s203 + $0x11c] sm:$0xf]
        %v325 = vld [vmem:[%s203 + $0x120] sm:$0xf]
        %v326 = vld [vmem:[%s203 + $0x124] sm:$0xf]
        %v327 = vld [vmem:[%s203 + $0x128] sm:$0xf]
        %v328 = vld [vmem:[%s203 + $0x12c] sm:$0xf]
        %v329 = vld [vmem:[%s203 + $0x130] sm:$0xf]
        %v330 = vld [vmem:[%s203 + $0x134] sm:$0xf]
        %v331 = vld [vmem:[%s203 + $0x138] sm:$0xf]
        %v332 = vld [vmem:[%s203 + $0x13c] sm:$0xf]
        %v333 = vld [vmem:[%s203 + $0x140] sm:$0xf]
        %v334 = vld [vmem:[%s203 + $0x144] sm:$0xf]
        %v335 = vld [vmem:[%s203 + $0x148] sm:$0xf]
        %v336 = vld [vmem:[%s203 + $0x14c] sm:$0xf]
        %v337 = vld [vmem:[%s203 + $0x150] sm:$0xf]
        %v338 = vld [vmem:[%s203 + $0x154] sm:$0xf]
        %v339 = vld [vmem:[%s203 + $0x158] sm:$0xf]
        %v340 = vld [vmem:[%s203 + $0x15c] sm:$0xf]
        %v341 = vld [vmem:[%s203 + $0x160] sm:$0xf]
        %v342 = vld [vmem:[%s203 + $0x164] sm:$0xf]
        %v343 = vld [vmem:[%s203 + $0x168] sm:$0xf]
        %v344 = vld [vmem:[%s203 + $0x16c] sm:$0xf]
        %v345 = vld [vmem:[%s203 + $0x170] sm:$0xf]
        %v346 = vld [vmem:[%s203 + $0x174] sm:$0xf]
        %v347 = vld [vmem:[%s203 + $0x178] sm:$0xf]
        %v348 = vld [vmem:[%s203 + $0x17c] sm:$0xf]
        %v349 = vld [vmem:[%s203 + $0x180] sm:$0xf]
        %v350 = vld [vmem:[%s203 + $0x184] sm:$0xf]
        %v351 = vld [vmem:[%s203 + $0x188] sm:$0xf]
        %v352 = vld [vmem:[%s203 + $0x18c] sm:$0xf]
        %v353 = vld [vmem:[%s203 + $0x190] sm:$0xf]
        %v354 = vld [vmem:[%s203 + $0x194] sm:$0xf]
        %v355 = vld [vmem:[%s203 + $0x198] sm:$0xf]
        %v356 = vld [vmem:[%s203 + $0x19c] sm:$0xf]
        %v357 = vld [vmem:[%s203 + $0x1a0] sm:$0xf]
        %v358 = vld [vmem:[%s203 + $0x1a4] sm:$0xf]
        %v359 = vld [vmem:[%s203 + $0x1a8] sm:$0xf]
        %v360 = vld [vmem:[%s203 + $0x1ac] sm:$0xf]
        %v361 = vld [vmem:[%s203 + $0x1b0] sm:$0xf]
        %v362 = vld [vmem:[%s203 + $0x1b4] sm:$0xf]
        %v363 = vld [vmem:[%s203 + $0x1b8] sm:$0xf]
        %v364 = vld [vmem:[%s203 + $0x1bc] sm:$0xf]
        %v365 = vld [vmem:[%s203 + $0x1c0] sm:$0xf]
        %v366 = vld [vmem:[%s203 + $0x1c4] sm:$0xf]
        %v367 = vld [vmem:[%s203 + $0x1c8] sm:$0xf]
        %v368 = vld [vmem:[%s203 + $0x1cc] sm:$0xf]
        %v369 = vld [vmem:[%s203 + $0x1d0] sm:$0xf]
        %v370 = vld [vmem:[%s203 + $0x1d4] sm:$0xf]
        %v371 = vld [vmem:[%s203 + $0x1d8] sm:$0xf]
        %v372 = vld [vmem:[%s203 + $0x1dc] sm:$0xf]
        %v373 = vld [vmem:[%s203 + $0x1e0] sm:$0xf]
        %v374 = vld [vmem:[%s203 + $0x1e4] sm:$0xf]
        %v375 = vld [vmem:[%s203 + $0x1e8] sm:$0xf]
        %v376 = vld [vmem:[%s203 + $0x1ec] sm:$0xf]
        %v377 = vld [vmem:[%s203 + $0x1f0] sm:$0xf]
        %v378 = vld [vmem:[%s203 + $0x1f4] sm:$0xf]
        %v379 = vld [vmem:[%s203 + $0x1f8] sm:$0xf]
        %v380 = vld [vmem:[%s243] sm:$0xf]
        %v381 = vld [vmem:[%s243 + $0x4] sm:$0xf]
        %v382 = vld [vmem:[%s243 + $0x8] sm:$0xf]
        %v383 = vld [vmem:[%s243 + $0xc] sm:$0xf]
        %v384 = vld [vmem:[%s243 + $0x10] sm:$0xf]
        %v385 = vld [vmem:[%s243 + $0x14] sm:$0xf]
        %v386 = vld [vmem:[%s243 + $0x18] sm:$0xf]
        %v387 = vld [vmem:[%s243 + $0x1c] sm:$0xf]
        %v388 = vld [vmem:[%s243 + $0x20] sm:$0xf]
        %v389 = vld [vmem:[%s243 + $0x24] sm:$0xf]
        %v390 = vld [vmem:[%s243 + $0x28] sm:$0xf]
        %v391 = vld [vmem:[%s243 + $0x2c] sm:$0xf]
        %v392 = vld [vmem:[%s243 + $0x30] sm:$0xf]
        %v393 = vld [vmem:[%s243 + $0x34] sm:$0xf]
        %v394 = vld [vmem:[%s243 + $0x38] sm:$0xf]
        %v395 = vld [vmem:[%s243 + $0x3c] sm:$0x1]
        %v396 = vld [vmem:[#allocation4] sm:$0x1]
        %v398 = vperm.slane %v396, 0
        %v527 = vunpack.c.l.b16 %v253
        %v528 = vunpack.c.l.b16 %v254
        %v529 = vunpack.c.l.b16 %v255
        %v530 = vunpack.c.l.b16 %v256
        %v531 = vunpack.c.l.b16 %v257
        %v532 = vunpack.c.l.b16 %v258
        %v533 = vunpack.c.l.b16 %v259
        %v534 = vunpack.c.l.b16 %v260
        %v535 = vunpack.c.l.b16 %v261
        %v536 = vunpack.c.l.b16 %v262
        %v537 = vunpack.c.l.b16 %v263
        %v538 = vunpack.c.l.b16 %v264
        %v539 = vunpack.c.l.b16 %v265
        %v540 = vunpack.c.l.b16 %v266
        %v541 = vunpack.c.l.b16 %v267
        %v542 = vunpack.c.l.b16 %v268
        %v543 = vunpack.c.l.b16 %v269
        %v544 = vunpack.c.l.b16 %v270
        %v545 = vunpack.c.l.b16 %v271
        %v546 = vunpack.c.l.b16 %v272
        %v547 = vunpack.c.l.b16 %v273
        %v548 = vunpack.c.l.b16 %v274
        %v549 = vunpack.c.l.b16 %v275
        %v550 = vunpack.c.l.b16 %v276
        %v551 = vunpack.c.l.b16 %v277
        %v552 = vunpack.c.l.b16 %v278
        %v553 = vunpack.c.l.b16 %v279
        %v554 = vunpack.c.l.b16 %v280
        %v555 = vunpack.c.l.b16 %v281
        %v556 = vunpack.c.l.b16 %v282
        %v557 = vunpack.c.l.b16 %v283
        %v558 = vunpack.c.l.b16 %v284
        %v559 = vunpack.c.l.b16 %v285
        %v560 = vunpack.c.l.b16 %v286
        %v561 = vunpack.c.l.b16 %v287
        %v562 = vunpack.c.l.b16 %v288
        %v563 = vunpack.c.l.b16 %v289
        %v564 = vunpack.c.l.b16 %v290
        %v565 = vunpack.c.l.b16 %v291
        %v566 = vunpack.c.l.b16 %v292
        %v567 = vunpack.c.l.b16 %v293
        %v568 = vunpack.c.l.b16 %v294
        %v569 = vunpack.c.l.b16 %v295
        %v570 = vunpack.c.l.b16 %v296
        %v571 = vunpack.c.l.b16 %v297
        %v572 = vunpack.c.l.b16 %v298
        %v573 = vunpack.c.l.b16 %v299
        %v574 = vunpack.c.l.b16 %v300
        %v575 = vunpack.c.l.b16 %v301
        %v576 = vunpack.c.l.b16 %v302
        %v577 = vunpack.c.l.b16 %v303
        %v578 = vunpack.c.l.b16 %v304
        %v579 = vunpack.c.l.b16 %v305
        %v580 = vunpack.c.l.b16 %v306
        %v581 = vunpack.c.l.b16 %v307
        %v582 = vunpack.c.l.b16 %v308
        %v583 = vunpack.c.l.b16 %v309
        %v584 = vunpack.c.l.b16 %v310
        %v585 = vunpack.c.l.b16 %v311
        %v586 = vunpack.c.l.b16 %v312
        %v587 = vunpack.c.l.b16 %v313
        %v588 = vunpack.c.l.b16 %v314
        %v589 = vunpack.c.l.b16 %v315
        %v590 = vunpack.c.l.b16 %v316
        %v591 = vunpack.c.l.b16 %v317
        %v592 = vunpack.c.l.b16 %v318
        %v593 = vunpack.c.l.b16 %v319
        %v594 = vunpack.c.l.b16 %v320
        %v595 = vunpack.c.l.b16 %v321
        %v596 = vunpack.c.l.b16 %v322
        %v597 = vunpack.c.l.b16 %v323
        %v598 = vunpack.c.l.b16 %v324
        %v599 = vunpack.c.l.b16 %v325
        %v600 = vunpack.c.l.b16 %v326
        %v601 = vunpack.c.l.b16 %v327
        %v602 = vunpack.c.l.b16 %v328
        %v603 = vunpack.c.l.b16 %v329
        %v604 = vunpack.c.l.b16 %v330
        %v605 = vunpack.c.l.b16 %v331
        %v606 = vunpack.c.l.b16 %v332
        %v607 = vunpack.c.l.b16 %v333
        %v608 = vunpack.c.l.b16 %v334
        %v609 = vunpack.c.l.b16 %v335
        %v610 = vunpack.c.l.b16 %v336
        %v611 = vunpack.c.l.b16 %v337
        %v612 = vunpack.c.l.b16 %v338
        %v613 = vunpack.c.l.b16 %v339
        %v614 = vunpack.c.l.b16 %v340
        %v615 = vunpack.c.l.b16 %v341
        %v616 = vunpack.c.l.b16 %v342
        %v617 = vunpack.c.l.b16 %v343
        %v618 = vunpack.c.l.b16 %v344
        %v619 = vunpack.c.l.b16 %v345
        %v620 = vunpack.c.l.b16 %v346
        %v621 = vunpack.c.l.b16 %v347
        %v622 = vunpack.c.l.b16 %v348
        %v623 = vunpack.c.l.b16 %v349
        %v624 = vunpack.c.l.b16 %v350
        %v625 = vunpack.c.l.b16 %v351
        %v626 = vunpack.c.l.b16 %v352
        %v627 = vunpack.c.l.b16 %v353
        %v628 = vunpack.c.l.b16 %v354
        %v629 = vunpack.c.l.b16 %v355
        %v630 = vunpack.c.l.b16 %v356
        %v631 = vunpack.c.l.b16 %v357
        %v632 = vunpack.c.l.b16 %v358
        %v633 = vunpack.c.l.b16 %v359
        %v634 = vunpack.c.l.b16 %v360
        %v635 = vunpack.c.l.b16 %v361
        %v636 = vunpack.c.l.b16 %v362
        %v637 = vunpack.c.l.b16 %v363
        %v638 = vunpack.c.l.b16 %v364
        %v639 = vunpack.c.l.b16 %v365
        %v640 = vunpack.c.l.b16 %v366
        %v641 = vunpack.c.l.b16 %v367
        %v642 = vunpack.c.l.b16 %v368
        %v643 = vunpack.c.l.b16 %v369
        %v644 = vunpack.c.l.b16 %v370
        %v645 = vunpack.c.l.b16 %v371
        %v646 = vunpack.c.l.b16 %v372
        %v647 = vunpack.c.l.b16 %v373
        %v648 = vunpack.c.l.b16 %v374
        %v649 = vunpack.c.l.b16 %v375
        %v650 = vunpack.c.l.b16 %v376
        %v651 = vunpack.c.l.b16 %v377
        %v652 = vunpack.c.l.b16 %v378
        %v653 = vunpack.c.l.b16 %v379
        %v654 = vpack.c.b16 %v528, %v527
        %v655 = vpack.c.b16 %v530, %v529
        %v656 = vpack.c.b16 %v532, %v531
        %v657 = vpack.c.b16 %v534, %v533
        %v658 = vpack.c.b16 %v536, %v535
        %v659 = vpack.c.b16 %v538, %v537
        %v660 = vpack.c.b16 %v540, %v539
        %v661 = vpack.c.b16 %v542, %v541
        %v662 = vpack.c.b16 %v544, %v543
        %v663 = vpack.c.b16 %v546, %v545
        %v664 = vpack.c.b16 %v548, %v547
        %v665 = vpack.c.b16 %v550, %v549
        %v666 = vpack.c.b16 %v552, %v551
        %v667 = vpack.c.b16 %v554, %v553
        %v668 = vpack.c.b16 %v556, %v555
        %v669 = vpack.c.b16 %v558, %v557
        %v670 = vpack.c.b16 %v560, %v559
        %v671 = vpack.c.b16 %v562, %v561
        %v672 = vpack.c.b16 %v564, %v563
        %v673 = vpack.c.b16 %v566, %v565
        %v674 = vpack.c.b16 %v568, %v567
        %v675 = vpack.c.b16 %v570, %v569
        %v676 = vpack.c.b16 %v572, %v571
        %v677 = vpack.c.b16 %v574, %v573
        %v678 = vpack.c.b16 %v576, %v575
        %v679 = vpack.c.b16 %v578, %v577
        %v680 = vpack.c.b16 %v580, %v579
        %v681 = vpack.c.b16 %v582, %v581
        %v682 = vpack.c.b16 %v584, %v583
        %v683 = vpack.c.b16 %v586, %v585
        %v684 = vpack.c.b16 %v588, %v587
        %v685 = vpack.c.b16 %v590, %v589
        %v686 = vpack.c.b16 %v592, %v591
        %v687 = vpack.c.b16 %v594, %v593
        %v688 = vpack.c.b16 %v596, %v595
        %v689 = vpack.c.b16 %v598, %v597
        %v690 = vpack.c.b16 %v600, %v599
        %v691 = vpack.c.b16 %v602, %v601
        %v692 = vpack.c.b16 %v604, %v603
        %v693 = vpack.c.b16 %v606, %v605
        %v694 = vpack.c.b16 %v608, %v607
        %v695 = vpack.c.b16 %v610, %v609
        %v696 = vpack.c.b16 %v612, %v611
        %v697 = vpack.c.b16 %v614, %v613
        %v698 = vpack.c.b16 %v616, %v615
        %v699 = vpack.c.b16 %v618, %v617
        %v700 = vpack.c.b16 %v620, %v619
        %v701 = vpack.c.b16 %v622, %v621
        %v702 = vpack.c.b16 %v624, %v623
        %v703 = vpack.c.b16 %v626, %v625
        %v704 = vpack.c.b16 %v628, %v627
        %v705 = vpack.c.b16 %v630, %v629
        %v706 = vpack.c.b16 %v632, %v631
        %v707 = vpack.c.b16 %v634, %v633
        %v708 = vpack.c.b16 %v636, %v635
        %v709 = vpack.c.b16 %v638, %v637
        %v710 = vpack.c.b16 %v640, %v639
        %v711 = vpack.c.b16 %v642, %v641
        %v712 = vpack.c.b16 %v644, %v643
        %v713 = vpack.c.b16 %v646, %v645
        %v714 = vpack.c.b16 %v648, %v647
        %v715 = vpack.c.b16 %v650, %v649
        %v716 = vpack.c.b16 %v652, %v651
        %v717 = vpack.c.b16 %v653, %v653
        %v734 = vunpack.c.l.b16 %v380
        %v735 = vunpack.c.l.b16 %v381
        %v736 = vunpack.c.l.b16 %v382
        %v737 = vunpack.c.l.b16 %v383
        %v738 = vunpack.c.l.b16 %v384
        %v739 = vunpack.c.l.b16 %v385
        %v740 = vunpack.c.l.b16 %v386
        %v741 = vunpack.c.l.b16 %v387
        %v742 = vunpack.c.l.b16 %v388
        %v743 = vunpack.c.l.b16 %v389
        %v744 = vunpack.c.l.b16 %v390
        %v745 = vunpack.c.l.b16 %v391
        %v746 = vunpack.c.l.b16 %v392
        %v747 = vunpack.c.l.b16 %v393
        %v748 = vunpack.c.l.b16 %v394
        %v749 = vunpack.c.l.b16 %v395
        %v750 = vpack.c.b16 %v735, %v734
        %v751 = vpack.c.b16 %v737, %v736
        %v752 = vpack.c.b16 %v739, %v738
        %v753 = vpack.c.b16 %v741, %v740
        %v754 = vpack.c.b16 %v743, %v742
        %v755 = vpack.c.b16 %v745, %v744
        %v756 = vpack.c.b16 %v747, %v746
        %v757 = vpack.c.b16 %v749, %v748
        %vm765 = vcmask 990208
        %v767 = vsel %vm765, %v654, 0
        %v770 = vsel %vm765, %v655, 0
        %v773 = vsel %vm765, %v656, 0
        %v776 = vsel %vm765, %v657, 0
        %v779 = vsel %vm765, %v658, 0
        %v782 = vsel %vm765, %v659, 0
        %v785 = vsel %vm765, %v660, 0
        %v788 = vsel %vm765, %v661, 0
        %v791 = vsel %vm765, %v662, 0
        %v794 = vsel %vm765, %v663, 0
        %v797 = vsel %vm765, %v664, 0
        %v800 = vsel %vm765, %v665, 0
        %v803 = vsel %vm765, %v666, 0
        %v806 = vsel %vm765, %v667, 0
        %v809 = vsel %vm765, %v668, 0
        %v812 = vsel %vm765, %v669, 0
        %v815 = vsel %vm765, %v670, 0
        %v818 = vsel %vm765, %v671, 0
        %v821 = vsel %vm765, %v672, 0
        %v824 = vsel %vm765, %v673, 0
        %v827 = vsel %vm765, %v674, 0
        %v830 = vsel %vm765, %v675, 0
        %v833 = vsel %vm765, %v676, 0
        %v836 = vsel %vm765, %v677, 0
        %v839 = vsel %vm765, %v678, 0
        %v842 = vsel %vm765, %v679, 0
        %v845 = vsel %vm765, %v680, 0
        %v848 = vsel %vm765, %v681, 0
        %v851 = vsel %vm765, %v682, 0
        %v854 = vsel %vm765, %v683, 0
        %v857 = vsel %vm765, %v684, 0
        %v860 = vsel %vm765, %v685, 0
        %v863 = vsel %vm765, %v686, 0
        %v866 = vsel %vm765, %v687, 0
        %v869 = vsel %vm765, %v688, 0
        %v872 = vsel %vm765, %v689, 0
        %v875 = vsel %vm765, %v690, 0
        %v878 = vsel %vm765, %v691, 0
        %v881 = vsel %vm765, %v692, 0
        %v884 = vsel %vm765, %v693, 0
        %v887 = vsel %vm765, %v694, 0
        %v890 = vsel %vm765, %v695, 0
        %v893 = vsel %vm765, %v696, 0
        %v896 = vsel %vm765, %v697, 0
        %v899 = vsel %vm765, %v698, 0
        %v902 = vsel %vm765, %v699, 0
        %v905 = vsel %vm765, %v700, 0
        %v908 = vsel %vm765, %v701, 0
        %v911 = vsel %vm765, %v702, 0
        %v914 = vsel %vm765, %v703, 0
        %v917 = vsel %vm765, %v704, 0
        %v920 = vsel %vm765, %v705, 0
        %v923 = vsel %vm765, %v706, 0
        %v926 = vsel %vm765, %v707, 0
        %v929 = vsel %vm765, %v708, 0
        %v932 = vsel %vm765, %v709, 0
        %v935 = vsel %vm765, %v710, 0
        %v938 = vsel %vm765, %v711, 0
        %v941 = vsel %vm765, %v712, 0
        %v944 = vsel %vm765, %v713, 0
        %v947 = vsel %vm765, %v714, 0
        %v950 = vsel %vm765, %v715, 0
        %v953 = vsel %vm765, %v716, 0
        %v956 = vsel %vm765, %v717, 0
        %vm958 = vcmask 1043456
        %vm959 = vcmask 1044480
        %v960 = vsel %vm958, 4294967295, 65535
        %v961 = vsel %vm959, %v960, 0
        %v963 = vand.u32 %v757, %v961
        %965 = vmatpush.bf16.msra.mxu0 %v963
        %966 = vmatpush.bf16.msra.mxu0 %v756
        %967 = vmatpush.bf16.msra.mxu0 %v755
        %968 = vmatpush.bf16.msra.mxu0 %v754
        %969 = vmatpush.bf16.msra.mxu0 %v753
        %970 = vmatpush.bf16.msra.mxu0 %v752
        %971 = vmatpush.bf16.msra.mxu0 %v751
        %972 = vmatpush.bf16.msra.mxu0 %v750
        %973 = vmatmul.bf16.gmra.mxu0 %v767
        %v974 = vpop.f32.mrf.mxu0
        %v975 = vadd.f32 %v398, %v974
        %v976 = vpop.f32.mrf.mxu0
        %v977 = vadd.f32 %v398, %v976
        %978 = vmatmul.bf16.gmra.mxu0 %v770
        %v979 = vpop.f32.mrf.mxu0
        %v980 = vadd.f32 %v398, %v979
        %v981 = vpop.f32.mrf.mxu0
        %v982 = vadd.f32 %v398, %v981
        %983 = vmatmul.bf16.gmra.mxu0 %v773
        %v984 = vpop.f32.mrf.mxu0
        %v985 = vadd.f32 %v398, %v984
        %v986 = vpop.f32.mrf.mxu0
        %v987 = vadd.f32 %v398, %v986
        %988 = vmatmul.bf16.gmra.mxu0 %v776
        %v989 = vpop.f32.mrf.mxu0
        %v990 = vadd.f32 %v398, %v989
        %v991 = vpop.f32.mrf.mxu0
        %v992 = vadd.f32 %v398, %v991
        %993 = vmatmul.bf16.gmra.mxu0 %v779
        %v994 = vpop.f32.mrf.mxu0
        %v995 = vadd.f32 %v398, %v994
        %v996 = vpop.f32.mrf.mxu0
        %v997 = vadd.f32 %v398, %v996
        %998 = vmatmul.bf16.gmra.mxu0 %v782
        %v999 = vpop.f32.mrf.mxu0
        %v1000 = vadd.f32 %v398, %v999
        %v1001 = vpop.f32.mrf.mxu0
        %v1002 = vadd.f32 %v398, %v1001
        %1003 = vmatmul.bf16.gmra.mxu0 %v785
        %v1004 = vpop.f32.mrf.mxu0
        %v1005 = vadd.f32 %v398, %v1004
        %v1006 = vpop.f32.mrf.mxu0
        %v1007 = vadd.f32 %v398, %v1006
        %1008 = vmatmul.bf16.gmra.mxu0 %v788
        %v1009 = vpop.f32.mrf.mxu0
        %v1010 = vadd.f32 %v398, %v1009
        %v1011 = vpop.f32.mrf.mxu0
        %v1012 = vadd.f32 %v398, %v1011
        %1013 = vmatmul.bf16.gmra.mxu0 %v791
        %v1014 = vpop.f32.mrf.mxu0
        %v1015 = vadd.f32 %v398, %v1014
        %v1016 = vpop.f32.mrf.mxu0
        %v1017 = vadd.f32 %v398, %v1016
        %1018 = vmatmul.bf16.gmra.mxu0 %v794
        %v1019 = vpop.f32.mrf.mxu0
        %v1020 = vadd.f32 %v398, %v1019
        %v1021 = vpop.f32.mrf.mxu0
        %v1022 = vadd.f32 %v398, %v1021
        %1023 = vmatmul.bf16.gmra.mxu0 %v797
        %v1024 = vpop.f32.mrf.mxu0
        %v1025 = vadd.f32 %v398, %v1024
        %v1026 = vpop.f32.mrf.mxu0
        %v1027 = vadd.f32 %v398, %v1026
        %1028 = vmatmul.bf16.gmra.mxu0 %v800
        %v1029 = vpop.f32.mrf.mxu0
        %v1030 = vadd.f32 %v398, %v1029
        %v1031 = vpop.f32.mrf.mxu0
        %v1032 = vadd.f32 %v398, %v1031
        %1033 = vmatmul.bf16.gmra.mxu0 %v803
        %v1034 = vpop.f32.mrf.mxu0
        %v1035 = vadd.f32 %v398, %v1034
        %v1036 = vpop.f32.mrf.mxu0
        %v1037 = vadd.f32 %v398, %v1036
        %1038 = vmatmul.bf16.gmra.mxu0 %v806
        %v1039 = vpop.f32.mrf.mxu0
        %v1040 = vadd.f32 %v398, %v1039
        %v1041 = vpop.f32.mrf.mxu0
        %v1042 = vadd.f32 %v398, %v1041
        %1043 = vmatmul.bf16.gmra.mxu0 %v809
        %v1044 = vpop.f32.mrf.mxu0
        %v1045 = vadd.f32 %v398, %v1044
        %v1046 = vpop.f32.mrf.mxu0
        %v1047 = vadd.f32 %v398, %v1046
        %1048 = vmatmul.bf16.gmra.mxu0 %v812
        %v1049 = vpop.f32.mrf.mxu0
        %v1050 = vadd.f32 %v398, %v1049
        %v1051 = vpop.f32.mrf.mxu0
        %v1052 = vadd.f32 %v398, %v1051
        %1053 = vmatmul.bf16.gmra.mxu0 %v815
        %v1054 = vpop.f32.mrf.mxu0
        %v1055 = vadd.f32 %v398, %v1054
        %v1056 = vpop.f32.mrf.mxu0
        %v1057 = vadd.f32 %v398, %v1056
        %1058 = vmatmul.bf16.gmra.mxu0 %v818
        %v1059 = vpop.f32.mrf.mxu0
        %v1060 = vadd.f32 %v398, %v1059
        %v1061 = vpop.f32.mrf.mxu0
        %v1062 = vadd.f32 %v398, %v1061
        %1063 = vmatmul.bf16.gmra.mxu0 %v821
        %v1064 = vpop.f32.mrf.mxu0
        %v1065 = vadd.f32 %v398, %v1064
        %v1066 = vpop.f32.mrf.mxu0
        %v1067 = vadd.f32 %v398, %v1066
        %1068 = vmatmul.bf16.gmra.mxu0 %v824
        %v1069 = vpop.f32.mrf.mxu0
        %v1070 = vadd.f32 %v398, %v1069
        %v1071 = vpop.f32.mrf.mxu0
        %v1072 = vadd.f32 %v398, %v1071
        %1073 = vmatmul.bf16.gmra.mxu0 %v827
        %v1074 = vpop.f32.mrf.mxu0
        %v1075 = vadd.f32 %v398, %v1074
        %v1076 = vpop.f32.mrf.mxu0
        %v1077 = vadd.f32 %v398, %v1076
        %1078 = vmatmul.bf16.gmra.mxu0 %v830
        %v1079 = vpop.f32.mrf.mxu0
        %v1080 = vadd.f32 %v398, %v1079
        %v1081 = vpop.f32.mrf.mxu0
        %v1082 = vadd.f32 %v398, %v1081
        %1083 = vmatmul.bf16.gmra.mxu0 %v833
        %v1084 = vpop.f32.mrf.mxu0
        %v1085 = vadd.f32 %v398, %v1084
        %v1086 = vpop.f32.mrf.mxu0
        %v1087 = vadd.f32 %v398, %v1086
        %1088 = vmatmul.bf16.gmra.mxu0 %v836
        %v1089 = vpop.f32.mrf.mxu0
        %v1090 = vadd.f32 %v398, %v1089
        %v1091 = vpop.f32.mrf.mxu0
        %v1092 = vadd.f32 %v398, %v1091
        %1093 = vmatmul.bf16.gmra.mxu0 %v839
        %v1094 = vpop.f32.mrf.mxu0
        %v1095 = vadd.f32 %v398, %v1094
        %v1096 = vpop.f32.mrf.mxu0
        %v1097 = vadd.f32 %v398, %v1096
        %1098 = vmatmul.bf16.gmra.mxu0 %v842
        %v1099 = vpop.f32.mrf.mxu0
        %v1100 = vadd.f32 %v398, %v1099
        %v1101 = vpop.f32.mrf.mxu0
        %v1102 = vadd.f32 %v398, %v1101
        %1103 = vmatmul.bf16.gmra.mxu0 %v845
        %v1104 = vpop.f32.mrf.mxu0
        %v1105 = vadd.f32 %v398, %v1104
        %v1106 = vpop.f32.mrf.mxu0
        %v1107 = vadd.f32 %v398, %v1106
        %1108 = vmatmul.bf16.gmra.mxu0 %v848
        %v1109 = vpop.f32.mrf.mxu0
        %v1110 = vadd.f32 %v398, %v1109
        %v1111 = vpop.f32.mrf.mxu0
        %v1112 = vadd.f32 %v398, %v1111
        %1113 = vmatmul.bf16.gmra.mxu0 %v851
        %v1114 = vpop.f32.mrf.mxu0
        %v1115 = vadd.f32 %v398, %v1114
        %v1116 = vpop.f32.mrf.mxu0
        %v1117 = vadd.f32 %v398, %v1116
        %1118 = vmatmul.bf16.gmra.mxu0 %v854
        %v1119 = vpop.f32.mrf.mxu0
        %v1120 = vadd.f32 %v398, %v1119
        %v1121 = vpop.f32.mrf.mxu0
        %v1122 = vadd.f32 %v398, %v1121
        %1123 = vmatmul.bf16.gmra.mxu0 %v857
        %v1124 = vpop.f32.mrf.mxu0
        %v1125 = vadd.f32 %v398, %v1124
        %v1126 = vpop.f32.mrf.mxu0
        %v1127 = vadd.f32 %v398, %v1126
        %1128 = vmatmul.bf16.gmra.mxu0 %v860
        %v1129 = vpop.f32.mrf.mxu0
        %v1130 = vadd.f32 %v398, %v1129
        %v1131 = vpop.f32.mrf.mxu0
        %v1132 = vadd.f32 %v398, %v1131
        %1133 = vmatmul.bf16.gmra.mxu0 %v863
        %v1134 = vpop.f32.mrf.mxu0
        %v1135 = vadd.f32 %v398, %v1134
        %v1136 = vpop.f32.mrf.mxu0
        %v1137 = vadd.f32 %v398, %v1136
        %1138 = vmatmul.bf16.gmra.mxu0 %v866
        %v1139 = vpop.f32.mrf.mxu0
        %v1140 = vadd.f32 %v398, %v1139
        %v1141 = vpop.f32.mrf.mxu0
        %v1142 = vadd.f32 %v398, %v1141
        %1143 = vmatmul.bf16.gmra.mxu0 %v869
        %v1144 = vpop.f32.mrf.mxu0
        %v1145 = vadd.f32 %v398, %v1144
        %v1146 = vpop.f32.mrf.mxu0
        %v1147 = vadd.f32 %v398, %v1146
        %1148 = vmatmul.bf16.gmra.mxu0 %v872
        %v1149 = vpop.f32.mrf.mxu0
        %v1150 = vadd.f32 %v398, %v1149
        %v1151 = vpop.f32.mrf.mxu0
        %v1152 = vadd.f32 %v398, %v1151
        %1153 = vmatmul.bf16.gmra.mxu0 %v875
        %v1154 = vpop.f32.mrf.mxu0
        %v1155 = vadd.f32 %v398, %v1154
        %v1156 = vpop.f32.mrf.mxu0
        %v1157 = vadd.f32 %v398, %v1156
        %1158 = vmatmul.bf16.gmra.mxu0 %v878
        %v1159 = vpop.f32.mrf.mxu0
        %v1160 = vadd.f32 %v398, %v1159
        %v1161 = vpop.f32.mrf.mxu0
        %v1162 = vadd.f32 %v398, %v1161
        %1163 = vmatmul.bf16.gmra.mxu0 %v881
        %v1164 = vpop.f32.mrf.mxu0
        %v1165 = vadd.f32 %v398, %v1164
        %v1166 = vpop.f32.mrf.mxu0
        %v1167 = vadd.f32 %v398, %v1166
        %1168 = vmatmul.bf16.gmra.mxu0 %v884
        %v1169 = vpop.f32.mrf.mxu0
        %v1170 = vadd.f32 %v398, %v1169
        %v1171 = vpop.f32.mrf.mxu0
        %v1172 = vadd.f32 %v398, %v1171
        %1173 = vmatmul.bf16.gmra.mxu0 %v887
        %v1174 = vpop.f32.mrf.mxu0
        %v1175 = vadd.f32 %v398, %v1174
        %v1176 = vpop.f32.mrf.mxu0
        %v1177 = vadd.f32 %v398, %v1176
        %1178 = vmatmul.bf16.gmra.mxu0 %v890
        %v1179 = vpop.f32.mrf.mxu0
        %v1180 = vadd.f32 %v398, %v1179
        %v1181 = vpop.f32.mrf.mxu0
        %v1182 = vadd.f32 %v398, %v1181
        %1183 = vmatmul.bf16.gmra.mxu0 %v893
        %v1184 = vpop.f32.mrf.mxu0
        %v1185 = vadd.f32 %v398, %v1184
        %v1186 = vpop.f32.mrf.mxu0
        %v1187 = vadd.f32 %v398, %v1186
        %1188 = vmatmul.bf16.gmra.mxu0 %v896
        %v1189 = vpop.f32.mrf.mxu0
        %v1190 = vadd.f32 %v398, %v1189
        %v1191 = vpop.f32.mrf.mxu0
        %v1192 = vadd.f32 %v398, %v1191
        %1193 = vmatmul.bf16.gmra.mxu0 %v899
        %v1194 = vpop.f32.mrf.mxu0
        %v1195 = vadd.f32 %v398, %v1194
        %v1196 = vpop.f32.mrf.mxu0
        %v1197 = vadd.f32 %v398, %v1196
        %1198 = vmatmul.bf16.gmra.mxu0 %v902
        %v1199 = vpop.f32.mrf.mxu0
        %v1200 = vadd.f32 %v398, %v1199
        %v1201 = vpop.f32.mrf.mxu0
        %v1202 = vadd.f32 %v398, %v1201
        %1203 = vmatmul.bf16.gmra.mxu0 %v905
        %v1204 = vpop.f32.mrf.mxu0
        %v1205 = vadd.f32 %v398, %v1204
        %v1206 = vpop.f32.mrf.mxu0
        %v1207 = vadd.f32 %v398, %v1206
        %1208 = vmatmul.bf16.gmra.mxu0 %v908
        %v1209 = vpop.f32.mrf.mxu0
        %v1210 = vadd.f32 %v398, %v1209
        %v1211 = vpop.f32.mrf.mxu0
        %v1212 = vadd.f32 %v398, %v1211
        %1213 = vmatmul.bf16.gmra.mxu0 %v911
        %v1214 = vpop.f32.mrf.mxu0
        %v1215 = vadd.f32 %v398, %v1214
        %v1216 = vpop.f32.mrf.mxu0
        %v1217 = vadd.f32 %v398, %v1216
        %1218 = vmatmul.bf16.gmra.mxu0 %v914
        %v1219 = vpop.f32.mrf.mxu0
        %v1220 = vadd.f32 %v398, %v1219
        %v1221 = vpop.f32.mrf.mxu0
        %v1222 = vadd.f32 %v398, %v1221
        %1223 = vmatmul.bf16.gmra.mxu0 %v917
        %v1224 = vpop.f32.mrf.mxu0
        %v1225 = vadd.f32 %v398, %v1224
        %v1226 = vpop.f32.mrf.mxu0
        %v1227 = vadd.f32 %v398, %v1226
        %1228 = vmatmul.bf16.gmra.mxu0 %v920
        %v1229 = vpop.f32.mrf.mxu0
        %v1230 = vadd.f32 %v398, %v1229
        %v1231 = vpop.f32.mrf.mxu0
        %v1232 = vadd.f32 %v398, %v1231
        %1233 = vmatmul.bf16.gmra.mxu0 %v923
        %v1234 = vpop.f32.mrf.mxu0
        %v1235 = vadd.f32 %v398, %v1234
        %v1236 = vpop.f32.mrf.mxu0
        %v1237 = vadd.f32 %v398, %v1236
        %1238 = vmatmul.bf16.gmra.mxu0 %v926
        %v1239 = vpop.f32.mrf.mxu0
        %v1240 = vadd.f32 %v398, %v1239
        %v1241 = vpop.f32.mrf.mxu0
        %v1242 = vadd.f32 %v398, %v1241
        %1243 = vmatmul.bf16.gmra.mxu0 %v929
        %v1244 = vpop.f32.mrf.mxu0
        %v1245 = vadd.f32 %v398, %v1244
        %v1246 = vpop.f32.mrf.mxu0
        %v1247 = vadd.f32 %v398, %v1246
        %1248 = vmatmul.bf16.gmra.mxu0 %v932
        %v1249 = vpop.f32.mrf.mxu0
        %v1250 = vadd.f32 %v398, %v1249
        %v1251 = vpop.f32.mrf.mxu0
        %v1252 = vadd.f32 %v398, %v1251
        %1253 = vmatmul.bf16.gmra.mxu0 %v935
        %v1254 = vpop.f32.mrf.mxu0
        %v1255 = vadd.f32 %v398, %v1254
        %v1256 = vpop.f32.mrf.mxu0
        %v1257 = vadd.f32 %v398, %v1256
        %1258 = vmatmul.bf16.gmra.mxu0 %v938
        %v1259 = vpop.f32.mrf.mxu0
        %v1260 = vadd.f32 %v398, %v1259
        %v1261 = vpop.f32.mrf.mxu0
        %v1262 = vadd.f32 %v398, %v1261
        %1263 = vmatmul.bf16.gmra.mxu0 %v941
        %v1264 = vpop.f32.mrf.mxu0
        %v1265 = vadd.f32 %v398, %v1264
        %v1266 = vpop.f32.mrf.mxu0
        %v1267 = vadd.f32 %v398, %v1266
        %1268 = vmatmul.bf16.gmra.mxu0 %v944
        %v1269 = vpop.f32.mrf.mxu0
        %v1270 = vadd.f32 %v398, %v1269
        %v1271 = vpop.f32.mrf.mxu0
        %v1272 = vadd.f32 %v398, %v1271
        %1273 = vmatmul.bf16.gmra.mxu0 %v947
        %v1274 = vpop.f32.mrf.mxu0
        %v1275 = vadd.f32 %v398, %v1274
        %v1276 = vpop.f32.mrf.mxu0
        %v1277 = vadd.f32 %v398, %v1276
        %1278 = vmatmul.bf16.gmra.mxu0 %v950
        %v1279 = vpop.f32.mrf.mxu0
        %v1280 = vadd.f32 %v398, %v1279
        %v1281 = vpop.f32.mrf.mxu0
        %v1282 = vadd.f32 %v398, %v1281
        %1283 = vmatmul.bf16.gmra.mxu0 %v953
        %v1284 = vpop.f32.mrf.mxu0
        %v1285 = vadd.f32 %v398, %v1284
        %v1286 = vpop.f32.mrf.mxu0
        %v1287 = vadd.f32 %v398, %v1286
        %1288 = vmatmul.bf16.gmra.mxu0 %v956
        %v1289 = vpop.f32.mrf.mxu0
        %v1290 = vadd.f32 %v398, %v1289
        %v1291 = vpop.f32.mrf.mxu0
        %1292 = vdwg.mxu0
        %v1293 = vmax.f32 %v975, 0.0
        %v1294 = vmax.f32 %v977, 0.0
        %v1295 = vmax.f32 %v980, 0.0
        %v1296 = vmax.f32 %v982, 0.0
        %v1297 = vmax.f32 %v985, 0.0
        %v1298 = vmax.f32 %v987, 0.0
        %v1299 = vmax.f32 %v990, 0.0
        %v1300 = vmax.f32 %v992, 0.0
        %v1301 = vmax.f32 %v995, 0.0
        %v1302 = vmax.f32 %v997, 0.0
        %v1303 = vmax.f32 %v1000, 0.0
        %v1304 = vmax.f32 %v1002, 0.0
        %v1305 = vmax.f32 %v1005, 0.0
        %v1306 = vmax.f32 %v1007, 0.0
        %v1307 = vmax.f32 %v1010, 0.0
        %v1308 = vmax.f32 %v1012, 0.0
        %v1309 = vmax.f32 %v1015, 0.0
        %v1310 = vmax.f32 %v1017, 0.0
        %v1311 = vmax.f32 %v1020, 0.0
        %v1312 = vmax.f32 %v1022, 0.0
        %v1313 = vmax.f32 %v1025, 0.0
        %v1314 = vmax.f32 %v1027, 0.0
        %v1315 = vmax.f32 %v1030, 0.0
        %v1316 = vmax.f32 %v1032, 0.0
        %v1317 = vmax.f32 %v1035, 0.0
        %v1318 = vmax.f32 %v1037, 0.0
        %v1319 = vmax.f32 %v1040, 0.0
        %v1320 = vmax.f32 %v1042, 0.0
        %v1321 = vmax.f32 %v1045, 0.0
        %v1322 = vmax.f32 %v1047, 0.0
        %v1323 = vmax.f32 %v1050, 0.0
        %v1324 = vmax.f32 %v1052, 0.0
        %v1325 = vmax.f32 %v1055, 0.0
        %v1326 = vmax.f32 %v1057, 0.0
        %v1327 = vmax.f32 %v1060, 0.0
        %v1328 = vmax.f32 %v1062, 0.0
        %v1329 = vmax.f32 %v1065, 0.0
        %v1330 = vmax.f32 %v1067, 0.0
        %v1331 = vmax.f32 %v1070, 0.0
        %v1332 = vmax.f32 %v1072, 0.0
        %v1333 = vmax.f32 %v1075, 0.0
        %v1334 = vmax.f32 %v1077, 0.0
        %v1335 = vmax.f32 %v1080, 0.0
        %v1336 = vmax.f32 %v1082, 0.0
        %v1337 = vmax.f32 %v1085, 0.0
        %v1338 = vmax.f32 %v1087, 0.0
        %v1339 = vmax.f32 %v1090, 0.0
        %v1340 = vmax.f32 %v1092, 0.0
        %v1341 = vmax.f32 %v1095, 0.0
        %v1342 = vmax.f32 %v1097, 0.0
        %v1343 = vmax.f32 %v1100, 0.0
        %v1344 = vmax.f32 %v1102, 0.0
        %v1345 = vmax.f32 %v1105, 0.0
        %v1346 = vmax.f32 %v1107, 0.0
        %v1347 = vmax.f32 %v1110, 0.0
        %v1348 = vmax.f32 %v1112, 0.0
        %v1349 = vmax.f32 %v1115, 0.0
        %v1350 = vmax.f32 %v1117, 0.0
        %v1351 = vmax.f32 %v1120, 0.0
        %v1352 = vmax.f32 %v1122, 0.0
        %v1353 = vmax.f32 %v1125, 0.0
        %v1354 = vmax.f32 %v1127, 0.0
        %v1355 = vmax.f32 %v1130, 0.0
        %v1356 = vmax.f32 %v1132, 0.0
        %v1357 = vmax.f32 %v1135, 0.0
        %v1358 = vmax.f32 %v1137, 0.0
        %v1359 = vmax.f32 %v1140, 0.0
        %v1360 = vmax.f32 %v1142, 0.0
        %v1361 = vmax.f32 %v1145, 0.0
        %v1362 = vmax.f32 %v1147, 0.0
        %v1363 = vmax.f32 %v1150, 0.0
        %v1364 = vmax.f32 %v1152, 0.0
        %v1365 = vmax.f32 %v1155, 0.0
        %v1366 = vmax.f32 %v1157, 0.0
        %v1367 = vmax.f32 %v1160, 0.0
        %v1368 = vmax.f32 %v1162, 0.0
        %v1369 = vmax.f32 %v1165, 0.0
        %v1370 = vmax.f32 %v1167, 0.0
        %v1371 = vmax.f32 %v1170, 0.0
        %v1372 = vmax.f32 %v1172, 0.0
        %v1373 = vmax.f32 %v1175, 0.0
        %v1374 = vmax.f32 %v1177, 0.0
        %v1375 = vmax.f32 %v1180, 0.0
        %v1376 = vmax.f32 %v1182, 0.0
        %v1377 = vmax.f32 %v1185, 0.0
        %v1378 = vmax.f32 %v1187, 0.0
        %v1379 = vmax.f32 %v1190, 0.0
        %v1380 = vmax.f32 %v1192, 0.0
        %v1381 = vmax.f32 %v1195, 0.0
        %v1382 = vmax.f32 %v1197, 0.0
        %v1383 = vmax.f32 %v1200, 0.0
        %v1384 = vmax.f32 %v1202, 0.0
        %v1385 = vmax.f32 %v1205, 0.0
        %v1386 = vmax.f32 %v1207, 0.0
        %v1387 = vmax.f32 %v1210, 0.0
        %v1388 = vmax.f32 %v1212, 0.0
        %v1389 = vmax.f32 %v1215, 0.0
        %v1390 = vmax.f32 %v1217, 0.0
        %v1391 = vmax.f32 %v1220, 0.0
        %v1392 = vmax.f32 %v1222, 0.0
        %v1393 = vmax.f32 %v1225, 0.0
        %v1394 = vmax.f32 %v1227, 0.0
        %v1395 = vmax.f32 %v1230, 0.0
        %v1396 = vmax.f32 %v1232, 0.0
        %v1397 = vmax.f32 %v1235, 0.0
        %v1398 = vmax.f32 %v1237, 0.0
        %v1399 = vmax.f32 %v1240, 0.0
        %v1400 = vmax.f32 %v1242, 0.0
        %v1401 = vmax.f32 %v1245, 0.0
        %v1402 = vmax.f32 %v1247, 0.0
        %v1403 = vmax.f32 %v1250, 0.0
        %v1404 = vmax.f32 %v1252, 0.0
        %v1405 = vmax.f32 %v1255, 0.0
        %v1406 = vmax.f32 %v1257, 0.0
        %v1407 = vmax.f32 %v1260, 0.0
        %v1408 = vmax.f32 %v1262, 0.0
        %v1409 = vmax.f32 %v1265, 0.0
        %v1410 = vmax.f32 %v1267, 0.0
        %v1411 = vmax.f32 %v1270, 0.0
        %v1412 = vmax.f32 %v1272, 0.0
        %v1413 = vmax.f32 %v1275, 0.0
        %v1414 = vmax.f32 %v1277, 0.0
        %v1415 = vmax.f32 %v1280, 0.0
        %v1416 = vmax.f32 %v1282, 0.0
        %v1417 = vmax.f32 %v1285, 0.0
        %v1418 = vmax.f32 %v1287, 0.0
        %v1419 = vmax.f32 %v1290, 0.0
        %v1420 = vpack.c.bf16 %v1293, %v1293
        %v1421 = vpack.c.bf16 %v1294, %v1294
        %v1422 = vpack.c.bf16 %v1295, %v1295
        %v1423 = vpack.c.bf16 %v1296, %v1296
        %v1424 = vpack.c.bf16 %v1297, %v1297
        %v1425 = vpack.c.bf16 %v1298, %v1298
        %v1426 = vpack.c.bf16 %v1299, %v1299
        %v1427 = vpack.c.bf16 %v1300, %v1300
        %v1428 = vpack.c.bf16 %v1301, %v1301
        %v1429 = vpack.c.bf16 %v1302, %v1302
        %v1430 = vpack.c.bf16 %v1303, %v1303
        %v1431 = vpack.c.bf16 %v1304, %v1304
        %v1432 = vpack.c.bf16 %v1305, %v1305
        %v1433 = vpack.c.bf16 %v1306, %v1306
        %v1434 = vpack.c.bf16 %v1307, %v1307
        %v1435 = vpack.c.bf16 %v1308, %v1308
        %v1436 = vpack.c.bf16 %v1309, %v1309
        %v1437 = vpack.c.bf16 %v1310, %v1310
        %v1438 = vpack.c.bf16 %v1311, %v1311
        %v1439 = vpack.c.bf16 %v1312, %v1312
        %v1440 = vpack.c.bf16 %v1313, %v1313
        %v1441 = vpack.c.bf16 %v1314, %v1314
        %v1442 = vpack.c.bf16 %v1315, %v1315
        %v1443 = vpack.c.bf16 %v1316, %v1316
        %v1444 = vpack.c.bf16 %v1317, %v1317
        %v1445 = vpack.c.bf16 %v1318, %v1318
        %v1446 = vpack.c.bf16 %v1319, %v1319
        %v1447 = vpack.c.bf16 %v1320, %v1320
        %v1448 = vpack.c.bf16 %v1321, %v1321
        %v1449 = vpack.c.bf16 %v1322, %v1322
        %v1450 = vpack.c.bf16 %v1323, %v1323
        %v1451 = vpack.c.bf16 %v1324, %v1324
        %v1452 = vpack.c.bf16 %v1325, %v1325
        %v1453 = vpack.c.bf16 %v1326, %v1326
        %v1454 = vpack.c.bf16 %v1327, %v1327
        %v1455 = vpack.c.bf16 %v1328, %v1328
        %v1456 = vpack.c.bf16 %v1329, %v1329
        %v1457 = vpack.c.bf16 %v1330, %v1330
        %v1458 = vpack.c.bf16 %v1331, %v1331
        %v1459 = vpack.c.bf16 %v1332, %v1332
        %v1460 = vpack.c.bf16 %v1333, %v1333
        %v1461 = vpack.c.bf16 %v1334, %v1334
        %v1462 = vpack.c.bf16 %v1335, %v1335
        %v1463 = vpack.c.bf16 %v1336, %v1336
        %v1464 = vpack.c.bf16 %v1337, %v1337
        %v1465 = vpack.c.bf16 %v1338, %v1338
        %v1466 = vpack.c.bf16 %v1339, %v1339
        %v1467 = vpack.c.bf16 %v1340, %v1340
        %v1468 = vpack.c.bf16 %v1341, %v1341
        %v1469 = vpack.c.bf16 %v1342, %v1342
        %v1470 = vpack.c.bf16 %v1343, %v1343
        %v1471 = vpack.c.bf16 %v1344, %v1344
        %v1472 = vpack.c.bf16 %v1345, %v1345
        %v1473 = vpack.c.bf16 %v1346, %v1346
        %v1474 = vpack.c.bf16 %v1347, %v1347
        %v1475 = vpack.c.bf16 %v1348, %v1348
        %v1476 = vpack.c.bf16 %v1349, %v1349
        %v1477 = vpack.c.bf16 %v1350, %v1350
        %v1478 = vpack.c.bf16 %v1351, %v1351
        %v1479 = vpack.c.bf16 %v1352, %v1352
        %v1480 = vpack.c.bf16 %v1353, %v1353
        %v1481 = vpack.c.bf16 %v1354, %v1354
        %v1482 = vpack.c.bf16 %v1355, %v1355
        %v1483 = vpack.c.bf16 %v1356, %v1356
        %v1484 = vpack.c.bf16 %v1357, %v1357
        %v1485 = vpack.c.bf16 %v1358, %v1358
        %v1486 = vpack.c.bf16 %v1359, %v1359
        %v1487 = vpack.c.bf16 %v1360, %v1360
        %v1488 = vpack.c.bf16 %v1361, %v1361
        %v1489 = vpack.c.bf16 %v1362, %v1362
        %v1490 = vpack.c.bf16 %v1363, %v1363
        %v1491 = vpack.c.bf16 %v1364, %v1364
        %v1492 = vpack.c.bf16 %v1365, %v1365
        %v1493 = vpack.c.bf16 %v1366, %v1366
        %v1494 = vpack.c.bf16 %v1367, %v1367
        %v1495 = vpack.c.bf16 %v1368, %v1368
        %v1496 = vpack.c.bf16 %v1369, %v1369
        %v1497 = vpack.c.bf16 %v1370, %v1370
        %v1498 = vpack.c.bf16 %v1371, %v1371
        %v1499 = vpack.c.bf16 %v1372, %v1372
        %v1500 = vpack.c.bf16 %v1373, %v1373
        %v1501 = vpack.c.bf16 %v1374, %v1374
        %v1502 = vpack.c.bf16 %v1375, %v1375
        %v1503 = vpack.c.bf16 %v1376, %v1376
        %v1504 = vpack.c.bf16 %v1377, %v1377
        %v1505 = vpack.c.bf16 %v1378, %v1378
        %v1506 = vpack.c.bf16 %v1379, %v1379
        %v1507 = vpack.c.bf16 %v1380, %v1380
        %v1508 = vpack.c.bf16 %v1381, %v1381
        %v1509 = vpack.c.bf16 %v1382, %v1382
        %v1510 = vpack.c.bf16 %v1383, %v1383
        %v1511 = vpack.c.bf16 %v1384, %v1384
        %v1512 = vpack.c.bf16 %v1385, %v1385
        %v1513 = vpack.c.bf16 %v1386, %v1386
        %v1514 = vpack.c.bf16 %v1387, %v1387
        %v1515 = vpack.c.bf16 %v1388, %v1388
        %v1516 = vpack.c.bf16 %v1389, %v1389
        %v1517 = vpack.c.bf16 %v1390, %v1390
        %v1518 = vpack.c.bf16 %v1391, %v1391
        %v1519 = vpack.c.bf16 %v1392, %v1392
        %v1520 = vpack.c.bf16 %v1393, %v1393
        %v1521 = vpack.c.bf16 %v1394, %v1394
        %v1522 = vpack.c.bf16 %v1395, %v1395
        %v1523 = vpack.c.bf16 %v1396, %v1396
        %v1524 = vpack.c.bf16 %v1397, %v1397
        %v1525 = vpack.c.bf16 %v1398, %v1398
        %v1526 = vpack.c.bf16 %v1399, %v1399
        %v1527 = vpack.c.bf16 %v1400, %v1400
        %v1528 = vpack.c.bf16 %v1401, %v1401
        %v1529 = vpack.c.bf16 %v1402, %v1402
        %v1530 = vpack.c.bf16 %v1403, %v1403
        %v1531 = vpack.c.bf16 %v1404, %v1404
        %v1532 = vpack.c.bf16 %v1405, %v1405
        %v1533 = vpack.c.bf16 %v1406, %v1406
        %v1534 = vpack.c.bf16 %v1407, %v1407
        %v1535 = vpack.c.bf16 %v1408, %v1408
        %v1536 = vpack.c.bf16 %v1409, %v1409
        %v1537 = vpack.c.bf16 %v1410, %v1410
        %v1538 = vpack.c.bf16 %v1411, %v1411
        %v1539 = vpack.c.bf16 %v1412, %v1412
        %v1540 = vpack.c.bf16 %v1413, %v1413
        %v1541 = vpack.c.bf16 %v1414, %v1414
        %v1542 = vpack.c.bf16 %v1415, %v1415
        %v1543 = vpack.c.bf16 %v1416, %v1416
        %v1544 = vpack.c.bf16 %v1417, %v1417
        %v1545 = vpack.c.bf16 %v1418, %v1418
        %v1546 = vpack.c.bf16 %v1419, %v1419
        %vm1547 = vcmask 781312
        %1548 = vst.msk [vmem:[%s251] sm:$0xf] %vm1547, %v1420
        %1549 = vst.msk [vmem:[%s251 + $0x4] sm:$0xf] %vm1547, %v1421
        %1550 = vst.msk [vmem:[%s251 + $0x8] sm:$0xf] %vm1547, %v1422
        %1551 = vst.msk [vmem:[%s251 + $0xc] sm:$0xf] %vm1547, %v1423
        %1552 = vst.msk [vmem:[%s251 + $0x10] sm:$0xf] %vm1547, %v1424
        %1553 = vst.msk [vmem:[%s251 + $0x14] sm:$0xf] %vm1547, %v1425
        %1554 = vst.msk [vmem:[%s251 + $0x18] sm:$0xf] %vm1547, %v1426
        %1555 = vst.msk [vmem:[%s251 + $0x1c] sm:$0xf] %vm1547, %v1427
        %1556 = vst.msk [vmem:[%s251 + $0x20] sm:$0xf] %vm1547, %v1428
        %1557 = vst.msk [vmem:[%s251 + $0x24] sm:$0xf] %vm1547, %v1429
        %1558 = vst.msk [vmem:[%s251 + $0x28] sm:$0xf] %vm1547, %v1430
        %1559 = vst.msk [vmem:[%s251 + $0x2c] sm:$0xf] %vm1547, %v1431
        %1560 = vst.msk [vmem:[%s251 + $0x30] sm:$0xf] %vm1547, %v1432
        %1561 = vst.msk [vmem:[%s251 + $0x34] sm:$0xf] %vm1547, %v1433
        %1562 = vst.msk [vmem:[%s251 + $0x38] sm:$0xf] %vm1547, %v1434
        %1563 = vst.msk [vmem:[%s251 + $0x3c] sm:$0xf] %vm1547, %v1435
        %1564 = vst.msk [vmem:[%s251 + $0x40] sm:$0xf] %vm1547, %v1436
        %1565 = vst.msk [vmem:[%s251 + $0x44] sm:$0xf] %vm1547, %v1437
        %1566 = vst.msk [vmem:[%s251 + $0x48] sm:$0xf] %vm1547, %v1438
        %1567 = vst.msk [vmem:[%s251 + $0x4c] sm:$0xf] %vm1547, %v1439
        %1568 = vst.msk [vmem:[%s251 + $0x50] sm:$0xf] %vm1547, %v1440
        %1569 = vst.msk [vmem:[%s251 + $0x54] sm:$0xf] %vm1547, %v1441
        %1570 = vst.msk [vmem:[%s251 + $0x58] sm:$0xf] %vm1547, %v1442
        %1571 = vst.msk [vmem:[%s251 + $0x5c] sm:$0xf] %vm1547, %v1443
        %1572 = vst.msk [vmem:[%s251 + $0x60] sm:$0xf] %vm1547, %v1444
        %1573 = vst.msk [vmem:[%s251 + $0x64] sm:$0xf] %vm1547, %v1445
        %1574 = vst.msk [vmem:[%s251 + $0x68] sm:$0xf] %vm1547, %v1446
        %1575 = vst.msk [vmem:[%s251 + $0x6c] sm:$0xf] %vm1547, %v1447
        %1576 = vst.msk [vmem:[%s251 + $0x70] sm:$0xf] %vm1547, %v1448
        %1577 = vst.msk [vmem:[%s251 + $0x74] sm:$0xf] %vm1547, %v1449
        %1578 = vst.msk [vmem:[%s251 + $0x78] sm:$0xf] %vm1547, %v1450
        %1579 = vst.msk [vmem:[%s251 + $0x7c] sm:$0xf] %vm1547, %v1451
        %1580 = vst.msk [vmem:[%s251 + $0x80] sm:$0xf] %vm1547, %v1452
        %1581 = vst.msk [vmem:[%s251 + $0x84] sm:$0xf] %vm1547, %v1453
        %1582 = vst.msk [vmem:[%s251 + $0x88] sm:$0xf] %vm1547, %v1454
        %1583 = vst.msk [vmem:[%s251 + $0x8c] sm:$0xf] %vm1547, %v1455
        %1584 = vst.msk [vmem:[%s251 + $0x90] sm:$0xf] %vm1547, %v1456
        %1585 = vst.msk [vmem:[%s251 + $0x94] sm:$0xf] %vm1547, %v1457
        %1586 = vst.msk [vmem:[%s251 + $0x98] sm:$0xf] %vm1547, %v1458
        %1587 = vst.msk [vmem:[%s251 + $0x9c] sm:$0xf] %vm1547, %v1459
        %1588 = vst.msk [vmem:[%s251 + $0xa0] sm:$0xf] %vm1547, %v1460
        %1589 = vst.msk [vmem:[%s251 + $0xa4] sm:$0xf] %vm1547, %v1461
        %1590 = vst.msk [vmem:[%s251 + $0xa8] sm:$0xf] %vm1547, %v1462
        %1591 = vst.msk [vmem:[%s251 + $0xac] sm:$0xf] %vm1547, %v1463
        %1592 = vst.msk [vmem:[%s251 + $0xb0] sm:$0xf] %vm1547, %v1464
        %1593 = vst.msk [vmem:[%s251 + $0xb4] sm:$0xf] %vm1547, %v1465
        %1594 = vst.msk [vmem:[%s251 + $0xb8] sm:$0xf] %vm1547, %v1466
        %1595 = vst.msk [vmem:[%s251 + $0xbc] sm:$0xf] %vm1547, %v1467
        %1596 = vst.msk [vmem:[%s251 + $0xc0] sm:$0xf] %vm1547, %v1468
        %1597 = vst.msk [vmem:[%s251 + $0xc4] sm:$0xf] %vm1547, %v1469
        %1598 = vst.msk [vmem:[%s251 + $0xc8] sm:$0xf] %vm1547, %v1470
        %1599 = vst.msk [vmem:[%s251 + $0xcc] sm:$0xf] %vm1547, %v1471
        %1600 = vst.msk [vmem:[%s251 + $0xd0] sm:$0xf] %vm1547, %v1472
        %1601 = vst.msk [vmem:[%s251 + $0xd4] sm:$0xf] %vm1547, %v1473
        %1602 = vst.msk [vmem:[%s251 + $0xd8] sm:$0xf] %vm1547, %v1474
        %1603 = vst.msk [vmem:[%s251 + $0xdc] sm:$0xf] %vm1547, %v1475
        %1604 = vst.msk [vmem:[%s251 + $0xe0] sm:$0xf] %vm1547, %v1476
        %1605 = vst.msk [vmem:[%s251 + $0xe4] sm:$0xf] %vm1547, %v1477
        %1606 = vst.msk [vmem:[%s251 + $0xe8] sm:$0xf] %vm1547, %v1478
        %1607 = vst.msk [vmem:[%s251 + $0xec] sm:$0xf] %vm1547, %v1479
        %1608 = vst.msk [vmem:[%s251 + $0xf0] sm:$0xf] %vm1547, %v1480
        %1609 = vst.msk [vmem:[%s251 + $0xf4] sm:$0xf] %vm1547, %v1481
        %1610 = vst.msk [vmem:[%s251 + $0xf8] sm:$0xf] %vm1547, %v1482
        %1611 = vst.msk [vmem:[%s251 + $0xfc] sm:$0xf] %vm1547, %v1483
        %1612 = vst.msk [vmem:[%s251 + $0x100] sm:$0xf] %vm1547, %v1484
        %1613 = vst.msk [vmem:[%s251 + $0x104] sm:$0xf] %vm1547, %v1485
        %1614 = vst.msk [vmem:[%s251 + $0x108] sm:$0xf] %vm1547, %v1486
        %1615 = vst.msk [vmem:[%s251 + $0x10c] sm:$0xf] %vm1547, %v1487
        %1616 = vst.msk [vmem:[%s251 + $0x110] sm:$0xf] %vm1547, %v1488
        %1617 = vst.msk [vmem:[%s251 + $0x114] sm:$0xf] %vm1547, %v1489
        %1618 = vst.msk [vmem:[%s251 + $0x118] sm:$0xf] %vm1547, %v1490
        %1619 = vst.msk [vmem:[%s251 + $0x11c] sm:$0xf] %vm1547, %v1491
        %1620 = vst.msk [vmem:[%s251 + $0x120] sm:$0xf] %vm1547, %v1492
        %1621 = vst.msk [vmem:[%s251 + $0x124] sm:$0xf] %vm1547, %v1493
        %1622 = vst.msk [vmem:[%s251 + $0x128] sm:$0xf] %vm1547, %v1494
        %1623 = vst.msk [vmem:[%s251 + $0x12c] sm:$0xf] %vm1547, %v1495
        %1624 = vst.msk [vmem:[%s251 + $0x130] sm:$0xf] %vm1547, %v1496
        %1625 = vst.msk [vmem:[%s251 + $0x134] sm:$0xf] %vm1547, %v1497
        %1626 = vst.msk [vmem:[%s251 + $0x138] sm:$0xf] %vm1547, %v1498
        %1627 = vst.msk [vmem:[%s251 + $0x13c] sm:$0xf] %vm1547, %v1499
        %1628 = vst.msk [vmem:[%s251 + $0x140] sm:$0xf] %vm1547, %v1500
        %1629 = vst.msk [vmem:[%s251 + $0x144] sm:$0xf] %vm1547, %v1501
        %1630 = vst.msk [vmem:[%s251 + $0x148] sm:$0xf] %vm1547, %v1502
        %1631 = vst.msk [vmem:[%s251 + $0x14c] sm:$0xf] %vm1547, %v1503
        %1632 = vst.msk [vmem:[%s251 + $0x150] sm:$0xf] %vm1547, %v1504
        %1633 = vst.msk [vmem:[%s251 + $0x154] sm:$0xf] %vm1547, %v1505
        %1634 = vst.msk [vmem:[%s251 + $0x158] sm:$0xf] %vm1547, %v1506
        %1635 = vst.msk [vmem:[%s251 + $0x15c] sm:$0xf] %vm1547, %v1507
        %1636 = vst.msk [vmem:[%s251 + $0x160] sm:$0xf] %vm1547, %v1508
        %1637 = vst.msk [vmem:[%s251 + $0x164] sm:$0xf] %vm1547, %v1509
        %1638 = vst.msk [vmem:[%s251 + $0x168] sm:$0xf] %vm1547, %v1510
        %1639 = vst.msk [vmem:[%s251 + $0x16c] sm:$0xf] %vm1547, %v1511
        %1640 = vst.msk [vmem:[%s251 + $0x170] sm:$0xf] %vm1547, %v1512
        %1641 = vst.msk [vmem:[%s251 + $0x174] sm:$0xf] %vm1547, %v1513
        %1642 = vst.msk [vmem:[%s251 + $0x178] sm:$0xf] %vm1547, %v1514
        %1643 = vst.msk [vmem:[%s251 + $0x17c] sm:$0xf] %vm1547, %v1515
        %1644 = vst.msk [vmem:[%s251 + $0x180] sm:$0xf] %vm1547, %v1516
        %1645 = vst.msk [vmem:[%s251 + $0x184] sm:$0xf] %vm1547, %v1517
        %1646 = vst.msk [vmem:[%s251 + $0x188] sm:$0xf] %vm1547, %v1518
        %1647 = vst.msk [vmem:[%s251 + $0x18c] sm:$0xf] %vm1547, %v1519
        %1648 = vst.msk [vmem:[%s251 + $0x190] sm:$0xf] %vm1547, %v1520
        %1649 = vst.msk [vmem:[%s251 + $0x194] sm:$0xf] %vm1547, %v1521
        %1650 = vst.msk [vmem:[%s251 + $0x198] sm:$0xf] %vm1547, %v1522
        %1651 = vst.msk [vmem:[%s251 + $0x19c] sm:$0xf] %vm1547, %v1523
        %1652 = vst.msk [vmem:[%s251 + $0x1a0] sm:$0xf] %vm1547, %v1524
        %1653 = vst.msk [vmem:[%s251 + $0x1a4] sm:$0xf] %vm1547, %v1525
        %1654 = vst.msk [vmem:[%s251 + $0x1a8] sm:$0xf] %vm1547, %v1526
        %1655 = vst.msk [vmem:[%s251 + $0x1ac] sm:$0xf] %vm1547, %v1527
        %1656 = vst.msk [vmem:[%s251 + $0x1b0] sm:$0xf] %vm1547, %v1528
        %1657 = vst.msk [vmem:[%s251 + $0x1b4] sm:$0xf] %vm1547, %v1529
        %1658 = vst.msk [vmem:[%s251 + $0x1b8] sm:$0xf] %vm1547, %v1530
        %1659 = vst.msk [vmem:[%s251 + $0x1bc] sm:$0xf] %vm1547, %v1531
        %1660 = vst.msk [vmem:[%s251 + $0x1c0] sm:$0xf] %vm1547, %v1532
        %1661 = vst.msk [vmem:[%s251 + $0x1c4] sm:$0xf] %vm1547, %v1533
        %1662 = vst.msk [vmem:[%s251 + $0x1c8] sm:$0xf] %vm1547, %v1534
        %1663 = vst.msk [vmem:[%s251 + $0x1cc] sm:$0xf] %vm1547, %v1535
        %1664 = vst.msk [vmem:[%s251 + $0x1d0] sm:$0xf] %vm1547, %v1536
        %1665 = vst.msk [vmem:[%s251 + $0x1d4] sm:$0xf] %vm1547, %v1537
        %1666 = vst.msk [vmem:[%s251 + $0x1d8] sm:$0xf] %vm1547, %v1538
        %1667 = vst.msk [vmem:[%s251 + $0x1dc] sm:$0xf] %vm1547, %v1539
        %1668 = vst.msk [vmem:[%s251 + $0x1e0] sm:$0xf] %vm1547, %v1540
        %1669 = vst.msk [vmem:[%s251 + $0x1e4] sm:$0xf] %vm1547, %v1541
        %1670 = vst.msk [vmem:[%s251 + $0x1e8] sm:$0xf] %vm1547, %v1542
        %1671 = vst.msk [vmem:[%s251 + $0x1ec] sm:$0xf] %vm1547, %v1543
        %1672 = vst.msk [vmem:[%s251 + $0x1f0] sm:$0xf] %vm1547, %v1544
        %1673 = vst.msk [vmem:[%s251 + $0x1f4] sm:$0xf] %vm1547, %v1545
        %1674 = vst.msk [vmem:[%s251 + $0x1f8] sm:$0xf] %vm1547, %v1546
        %s1675 = smul.u32 127, %s22
        %p1676 = scmp.lt.s32.totalorder %s1675, 1904
        %s1677 = scalar_select %p1676, %s1675, 1904
        %p1678 = scmp.lt.s32.totalorder %s23, 0
        %s1679 = scalar_select %p1678, %s23, 0
        %s1680 = sadd.s32 %s1679, %s1677
        %s1681 = smul.addr %s1680, 4
        %s1682 = scalar_lea.vmem %s3, %s1681
        // Predicated region
        $region41: #{tpu_custom_call.1} parent=31 // pred_check
          %p1683 = pneg %p128
        $region42: #{tpu_custom_call.1} parent=31 // pred_check_branch
          %1685 = sbr.rel (%p1683) target = $region44
        $region43: #{tpu_custom_call.1} parent=31 // pred_region
          %s1686 = smul.u32 127, %s22
        $region44: #{tpu_custom_call.1} parent=31 // pred_fallthru
          _
      $region32: #{tpu_custom_call.1} parent=5 // pred_fallthru
        _
      %p1687 = scmp.le.s32.totalorder 2, %s13
      // Predicated region
      $region45: #{tpu_custom_call.1} parent=5 // pred_check
        %p1688 = pneg %p1687
      $region46: #{tpu_custom_call.1} parent=5 // pred_check_branch
        %1690 = sbr.rel (%p1688) target = $region48
      $region47: #{tpu_custom_call.1} parent=5 // pred_region
        %s1691 = ssub.s32 %s13, 2
        // Predicated region
        $region49: #{tpu_custom_call.1} parent=47 // pred_check
          %p1692 = pneg %p134
        $region50: #{tpu_custom_call.1} parent=47 // pred_check_branch
          %1694 = sbr.rel (%p1692) target = $region52
        $region51: #{tpu_custom_call.1} parent=47 // pred_region
          %s1695 = smul.u32 127, %s24
          %p1696 = scmp.lt.s32.totalorder %s1695, 1904
          %s1697 = scalar_select %p1696, %s1695, 1904
          %p1698 = scmp.lt.s32.totalorder %s25, 0
          %s1699 = scalar_select %p1698, %s25, 0
          %s1700 = sadd.s32 %s1699, %s1697
          %s1701 = smul.addr %s1700, 4
          %s1702 = scalar_lea.vmem %s3, %s1701
        $region52: #{tpu_custom_call.1} parent=47 // pred_fallthru
          _
      $region48: #{tpu_custom_call.1} parent=5 // pred_fallthru
        _
    $region6: #{tpu_custom_call.1} parent=1 // loop_footer
      %s17 = sadd.s32 1, %s13
    $region7: #{tpu_custom_call.1} parent=1 // loop_footer_branch
      %12 = sbr.rel target = $region3
    $region8: #{tpu_custom_call.1} parent=1 // loop_exit
      _
    %1703 = vsyncpa [#allocation3], 1
    %s1704 = scalar_lea.sflag [#allocation3], 1
    %1705 = vsyncpa %s1704, 1
    %1706 = vsyncpa [#allocation5], 1

</llo_original>
